<compile_context>
chip_gen: v7x
topology: tpu7x:2x2x1
jax: 0.10.0
libtpu: 0.0.40
codegen_flags: <defaults>
</compile_context>

<pallas_src>
import jax
import jax.numpy as jnp
from jax import lax
from jax.experimental import pallas as pl
from jax.experimental.pallas import tpu as pltpu

CS = 64      # space-to-depth(4) channels, padded 48 -> 64 (lane-aligned im2col taps)
CPAD = 128   # output channels padded 64 -> 128 (lane-dense stores & phase slices)


# ---------------------------------------------------------------------------
# Fused conv7x7(s2,p3) + bias + maxpool3x3(s2,p1) kernel
# ---------------------------------------------------------------------------
def _make_stem_kernel(pth, pw):
    """pth: pool rows per grid step, pw: pool output width (static)."""

    def kernel(x_ref, w_ref, b_ref, o_ref):
        # x_ref: (R4, C4, CS)      s2d(4) input image (bf16), VMEM-resident per image
        # w_ref: (9*CS, 4*CPAD)    folded weights: all 9 taps in K, all 4 phases in N
        # b_ref: (1, CPAD)         conv bias (f32)
        # o_ref: (pth, pw, CPAD)   pooled output rows (bf16), lane-dense
        q0 = pl.program_id(1) * pth
        bias = jnp.broadcast_to(b_ref[...], (pw, CPAD))      # hoisted out of the loop

        def row_colmax(r):
            # One matmul yields, for pool row r, conv rows {2r, 2r+1} at both column
            # parities.  Column-max over the pool's 3-wide window uses a sublane shift
            # with left-edge replication (exact for max with kernel 3 / pad 1).
            im = jnp.concatenate(
                [x_ref[r + a, pl.ds(b, pw), :] for a in range(3) for b in range(3)],
                axis=-1)                                     # (pw, 9*CS) bf16
            res = jnp.dot(im, w_ref[...],
                          preferred_element_type=jnp.float32)  # (pw, 4*CPAD) f32
            out = []
            for rho in (0, 1):
                c0 = res[:, (2 * rho) * CPAD:(2 * rho + 1) * CPAD]       # conv col 2p
                c1 = res[:, (2 * rho + 1) * CPAD:(2 * rho + 2) * CPAD]   # conv col 2p+1
                c1p = jnp.concatenate([c1[:1], c1[:pw - 1]], axis=0)     # conv col 2p-1
                out.append(jnp.maximum(jnp.maximum(c0, c1), c1p))
            return out                                       # [m_rho0, m_rho1], (pw, CPAD) f32

        # pool row q needs conv rows {2q-1, 2q, 2q+1}; 2q-1 is the previous odd conv row.
        # Clamping at the image top (replication) == PyTorch's -inf max-pool padding.
        m1_prev0 = row_colmax(jnp.maximum(q0 - 1, 0))[1]

        def body(i, m1_prev):
            m0, m1 = row_colmax(q0 + i)
            o_ref[i] = (jnp.maximum(jnp.maximum(m0, m1), m1_prev)
                        + bias).astype(o_ref.dtype)
            return m1

        lax.fori_loop(0, pth, body, m1_prev0)

    return kernel


# ---------------------------------------------------------------------------
# Wrapper: layout prep (tiny 3-channel tensors only) + pallas_call
# ---------------------------------------------------------------------------
def input_stem_forward(x_nchw, w_oihw, bias, *, output_layout="NCHW"):
    n, cin, h, w = x_nchw.shape
    cout = w_oihw.shape[0]
    assert cin == w_oihw.shape[1] == 3
    assert w_oihw.shape[2] == w_oihw.shape[3] == 7
    assert h % 4 == 0 and w % 4 == 0 and h >= 8 and w >= 8
    assert cout <= CPAD
    ph, pw = h // 4, w // 4              # pool output spatial dims

    # ---- input: NCHW->NHWC, zero-pad (3 top/left, 5 bottom/right), s2d by 4, bf16,
    #      pad the 48 s2d channels to 64 so every im2col tap is 64-lane aligned.
    x = jnp.transpose(x_nchw, (0, 2, 3, 1))
    x = jnp.pad(x, ((0, 0), (3, 5), (3, 5), (0, 0)))
    r4, c4 = (h + 8) // 4, (w + 8) // 4                      # = ph + 2, pw + 2
    x = x.reshape(n, r4, 4, c4, 4, cin).transpose(0, 1, 3, 2, 4, 5)
    x = x.reshape(n, r4, c4, 16 * cin)
    x = jnp.pad(x, ((0, 0), (0, 0), (0, 0), (0, CS - 16 * cin))).astype(jnp.bfloat16)

    # ---- weights: one folded (9*CS, 4*CPAD) matrix.
    #   K index = (a*3 + b)*CS + (dy*4 + dx)*cin + c              (s2d tap layout)
    #   N index = (rho*2 + kappa)*CPAD + co                       (4 conv phases)
    #   value   = W[co, c, 4a + dy - 2*rho, 4b + dx - 2*kappa]    (0 if outside 7x7)
    wt = jnp.transpose(w_oihw, (2, 3, 1, 0))                 # (7, 7, cin, cout)
    phases = []
    for rho in (0, 1):
        for kappa in (0, 1):
            wp = jnp.pad(wt, ((2 * rho, 5 - 2 * rho),
                              (2 * kappa, 5 - 2 * kappa), (0, 0), (0, 0)))  # (12,12,cin,cout)
            wp = wp.reshape(3, 4, 3, 4, cin, cout).transpose(0, 2, 1, 3, 4, 5)
            wp = wp.reshape(9, 16 * cin, cout)
            wp = jnp.pad(wp, ((0, 0), (0, CS - 16 * cin), (0, CPAD - cout)))
            phases.append(wp.reshape(9 * CS, CPAD))
    wm = jnp.concatenate(phases, axis=1).astype(jnp.bfloat16)     # (576, 512)
    bvec = jnp.pad(bias, (0, CPAD - cout)).astype(jnp.float32).reshape(1, CPAD)

    # ---- grid: (batch, row tiles).  Whole-image row tiles; split into two tiles when
    #      batch == 1 so a v7x chip still has >= 2 parallel grid steps for its 2 TCs.
    n_tiles = 2 if (n == 1 and ph % 2 == 0) else 1
    pth = ph // n_tiles
    grid = (n, n_tiles)

    out = pl.pallas_call(
        _make_stem_kernel(pth, pw),
        out_shape=jax.ShapeDtypeStruct((n, ph, pw, CPAD), jnp.bfloat16),
        grid_spec=pltpu.PrefetchScalarGridSpec(
            num_scalar_prefetch=0,
            grid=grid,
            in_specs=[
                # per-image s2d input: resident across the row-tile axis
                pl.BlockSpec((None, r4, c4, CS), lambda b, r: (b, 0, 0, 0)),
                # folded weights / bias: resident across the whole grid
                pl.BlockSpec((9 * CS, 4 * CPAD), lambda b, r: (0, 0)),
                pl.BlockSpec((1, CPAD), lambda b, r: (0, 0)),
            ],
            out_specs=pl.BlockSpec((None, pth, pw, CPAD), lambda b, r: (b, r, 0, 0)),
        ),
        compiler_params=pltpu.CompilerParams(
            dimension_semantics=("parallel", "parallel"),
            vmem_limit_bytes=32 * 1024 * 1024,
        ),
    )(x, wm, bvec)

    out = out[..., :cout]
    if output_layout == "NHWC":
        return out                        # native kernel layout (bf16), no extra HBM pass
    # exact module layout: NCHW float32 (extra XLA transpose pass — avoid if downstream
    # can consume NHWC bf16 directly).
    return jnp.transpose(out, (0, 3, 1, 2)).astype(jnp.float32)


# ---------------------------------------------------------------------------
# Pure-JAX reference (for in-script correctness check)
# ---------------------------------------------------------------------------
def input_stem_reference(x_nchw, w_oihw, bias):
    y = lax.conv_general_dilated(
        x_nchw, w_oihw, window_strides=(2, 2), padding=((3, 3), (3, 3)),
        dimension_numbers=("NCHW", "OIHW", "NCHW"),
        precision=lax.Precision.HIGHEST)
    y = y + bias.reshape(1, -1, 1, 1)
    return lax.reduce_window(y, -jnp.inf, lax.max,
                             (1, 1, 3, 3), (1, 1, 2, 2),
                             ((0, 0), (0, 0), (1, 1), (1, 1)))


if __name__ == "__main__":
    key = jax.random.PRNGKey(0)
    kx, kw, kb = jax.random.split(key, 3)
    n, cin, h, w_sp = 2, 3, 16, 16
    cout, ksz = 64, 7

    x = jax.random.normal(kx, (n, cin, h, w_sp), jnp.float32)
    w = jax.random.normal(kw, (cout, cin, ksz, ksz), jnp.float32) / jnp.sqrt(cin * ksz * ksz)
    b = 0.1 * jax.random.normal(kb, (cout,), jnp.float32)

    y = jax.jit(input_stem_forward)(x, w, b)
    y = jax.block_until_ready(y)
    assert y.shape == (n, cout, h // 4, w_sp // 4), y.shape
    assert bool(jnp.all(jnp.isfinite(y)))

    # correctness vs pure-JAX reference on the same bf16-rounded operands
    # (kernel accumulates in f32 and emits bf16 activations — deliberate precision choice)
    xq = x.astype(jnp.bfloat16).astype(jnp.float32)
    wq = w.astype(jnp.bfloat16).astype(jnp.float32)
    y_ref = input_stem_reference(xq, wq, b)
    err = float(jnp.max(jnp.abs(y - y_ref)))
    assert err < 2e-2, f"max abs err vs reference: {err}"

    print("KERNEL_OK")
</pallas_src>

<mosaic_0001>
module attributes {stable_mosaic.version = 11 : i64} {
  func.func @kernel(%arg0: i32, %arg1: i32, %arg2: memref<1x6x6x64xbf16, #tpu.memory_space<vmem>>, %arg3: memref<576x512xbf16, #tpu.memory_space<vmem>>, %arg4: memref<1x128xf32, #tpu.memory_space<vmem>>, %arg5: memref<1x4x4x128xbf16, #tpu.memory_space<vmem>>) attributes {dimension_semantics = [#tpu.dimension_semantics<parallel>, #tpu.dimension_semantics<parallel>], iteration_bounds = array<i64: 2, 1>, scalar_prefetch = 0 : i64, scratch_operands = 0 : i64, tpu.core_type = #tpu.core_type<tc>, window_params = [{transform_indices = @transform_0, window_bounds = array<i64: 1, 6, 6, 64>}, {pipeline_mode = #tpu.pipeline_mode<synchronous>, transform_indices = @transform_1, window_bounds = array<i64: 576, 512>}, {pipeline_mode = #tpu.pipeline_mode<synchronous>, transform_indices = @transform_2, window_bounds = array<i64: 1, 128>}, {transform_indices = @transform_3, window_bounds = array<i64: 1, 4, 4, 128>}]} {
    %c4_i32 = arith.constant 4 : i32
    %0 = arith.muli %arg1, %c4_i32 : i32
    %c0 = arith.constant 0 : index
    %c0_0 = arith.constant 0 : index
    %1 = vector.load %arg4[%c0, %c0_0] : memref<1x128xf32, #tpu.memory_space<vmem>>, vector<1x128xf32>
    %2 = vector.shape_cast %1 : vector<1x128xf32> to vector<1x128xf32>
    %3 = vector.broadcast %2 : vector<1x128xf32> to vector<4x128xf32>
    %c1_i32 = arith.constant 1 : i32
    %4 = arith.subi %0, %c1_i32 : i32
    %c0_i32 = arith.constant 0 : i32
    %5 = arith.maxsi %4, %c0_i32 : i32
    %c0_i32_1 = arith.constant 0 : i32
    %6 = arith.addi %5, %c0_i32_1 : i32
    %c0_2 = arith.constant 0 : index
    %7 = arith.index_cast %6 : i32 to index
    %c0_3 = arith.constant 0 : index
    %c0_4 = arith.constant 0 : index
    %8 = vector.load %arg2[%c0_2, %7, %c0_3, %c0_4] : memref<1x6x6x64xbf16, #tpu.memory_space<vmem>>, vector<1x1x4x64xbf16>
    %9 = vector.shape_cast %8 : vector<1x1x4x64xbf16> to vector<4x64xbf16>
    %c0_i32_5 = arith.constant 0 : i32
    %10 = arith.addi %5, %c0_i32_5 : i32
    %c0_6 = arith.constant 0 : index
    %11 = arith.index_cast %10 : i32 to index
    %c1 = arith.constant 1 : index
    %c0_7 = arith.constant 0 : index
    %12 = vector.load %arg2[%c0_6, %11, %c1, %c0_7] : memref<1x6x6x64xbf16, #tpu.memory_space<vmem>>, vector<1x1x4x64xbf16>
    %13 = vector.shape_cast %12 : vector<1x1x4x64xbf16> to vector<4x64xbf16>
    %c0_i32_8 = arith.constant 0 : i32
    %14 = arith.addi %5, %c0_i32_8 : i32
    %c0_9 = arith.constant 0 : index
    %15 = arith.index_cast %14 : i32 to index
    %c2 = arith.constant 2 : index
    %c0_10 = arith.constant 0 : index
    %16 = vector.load %arg2[%c0_9, %15, %c2, %c0_10] : memref<1x6x6x64xbf16, #tpu.memory_space<vmem>>, vector<1x1x4x64xbf16>
    %17 = vector.shape_cast %16 : vector<1x1x4x64xbf16> to vector<4x64xbf16>
    %c1_i32_11 = arith.constant 1 : i32
    %18 = arith.addi %5, %c1_i32_11 : i32
    %c0_12 = arith.constant 0 : index
    %19 = arith.index_cast %18 : i32 to index
    %c0_13 = arith.constant 0 : index
    %c0_14 = arith.constant 0 : index
    %20 = vector.load %arg2[%c0_12, %19, %c0_13, %c0_14] : memref<1x6x6x64xbf16, #tpu.memory_space<vmem>>, vector<1x1x4x64xbf16>
    %21 = vector.shape_cast %20 : vector<1x1x4x64xbf16> to vector<4x64xbf16>
    %c1_i32_15 = arith.constant 1 : i32
    %22 = arith.addi %5, %c1_i32_15 : i32
    %c0_16 = arith.constant 0 : index
    %23 = arith.index_cast %22 : i32 to index
    %c1_17 = arith.constant 1 : index
    %c0_18 = arith.constant 0 : index
    %24 = vector.load %arg2[%c0_16, %23, %c1_17, %c0_18] : memref<1x6x6x64xbf16, #tpu.memory_space<vmem>>, vector<1x1x4x64xbf16>
    %25 = vector.shape_cast %24 : vector<1x1x4x64xbf16> to vector<4x64xbf16>
    %c1_i32_19 = arith.constant 1 : i32
    %26 = arith.addi %5, %c1_i32_19 : i32
    %c0_20 = arith.constant 0 : index
    %27 = arith.index_cast %26 : i32 to index
    %c2_21 = arith.constant 2 : index
    %c0_22 = arith.constant 0 : index
    %28 = vector.load %arg2[%c0_20, %27, %c2_21, %c0_22] : memref<1x6x6x64xbf16, #tpu.memory_space<vmem>>, vector<1x1x4x64xbf16>
    %29 = vector.shape_cast %28 : vector<1x1x4x64xbf16> to vector<4x64xbf16>
    %c2_i32 = arith.constant 2 : i32
    %30 = arith.addi %5, %c2_i32 : i32
    %c0_23 = arith.constant 0 : index
    %31 = arith.index_cast %30 : i32 to index
    %c0_24 = arith.constant 0 : index
    %c0_25 = arith.constant 0 : index
    %32 = vector.load %arg2[%c0_23, %31, %c0_24, %c0_25] : memref<1x6x6x64xbf16, #tpu.memory_space<vmem>>, vector<1x1x4x64xbf16>
    %33 = vector.shape_cast %32 : vector<1x1x4x64xbf16> to vector<4x64xbf16>
    %c2_i32_26 = arith.constant 2 : i32
    %34 = arith.addi %5, %c2_i32_26 : i32
    %c0_27 = arith.constant 0 : index
    %35 = arith.index_cast %34 : i32 to index
    %c1_28 = arith.constant 1 : index
    %c0_29 = arith.constant 0 : index
    %36 = vector.load %arg2[%c0_27, %35, %c1_28, %c0_29] : memref<1x6x6x64xbf16, #tpu.memory_space<vmem>>, vector<1x1x4x64xbf16>
    %37 = vector.shape_cast %36 : vector<1x1x4x64xbf16> to vector<4x64xbf16>
    %c2_i32_30 = arith.constant 2 : i32
    %38 = arith.addi %5, %c2_i32_30 : i32
    %c0_31 = arith.constant 0 : index
    %39 = arith.index_cast %38 : i32 to index
    %c2_32 = arith.constant 2 : index
    %c0_33 = arith.constant 0 : index
    %40 = vector.load %arg2[%c0_31, %39, %c2_32, %c0_33] : memref<1x6x6x64xbf16, #tpu.memory_space<vmem>>, vector<1x1x4x64xbf16>
    %41 = vector.shape_cast %40 : vector<1x1x4x64xbf16> to vector<4x64xbf16>
    %42 = tpu.concatenate %9, %13, %17, %21, %25, %29, %33, %37, %41 in 1 : vector<4x64xbf16>, vector<4x64xbf16>, vector<4x64xbf16>, vector<4x64xbf16>, vector<4x64xbf16>, vector<4x64xbf16>, vector<4x64xbf16>, vector<4x64xbf16>, vector<4x64xbf16> -> vector<4x576xbf16>
    %c0_34 = arith.constant 0 : index
    %c0_35 = arith.constant 0 : index
    %43 = vector.load %arg3[%c0_34, %c0_35] : memref<576x512xbf16, #tpu.memory_space<vmem>>, vector<576x512xbf16>
    %cst = arith.constant dense<0.000000e+00> : vector<4x512xf32>
    %44 = tpu.matmul %42, %43, %cst {dimension_numbers = #tpu.dot_dimension_numbers<[1], [0], [0], [1], [0, 0, 1, 1], [], []>} : vector<4x576xbf16>, vector<576x512xbf16>, vector<4x512xf32> -> vector<4x512xf32>
    %45 = vector.extract_strided_slice %44 {offsets = [0, 256], sizes = [4, 128], strides = [1, 1]} : vector<4x512xf32> to vector<4x128xf32>
    %46 = vector.extract_strided_slice %44 {offsets = [0, 384], sizes = [4, 128], strides = [1, 1]} : vector<4x512xf32> to vector<4x128xf32>
    %47 = vector.extract_strided_slice %46 {offsets = [0, 0], sizes = [1, 128], strides = [1, 1]} : vector<4x128xf32> to vector<1x128xf32>
    %48 = vector.extract_strided_slice %46 {offsets = [0, 0], sizes = [3, 128], strides = [1, 1]} : vector<4x128xf32> to vector<3x128xf32>
    %49 = tpu.concatenate %47, %48 in 0 : vector<1x128xf32>, vector<3x128xf32> -> vector<4x128xf32>
    %50 = arith.maximumf %45, %46 : vector<4x128xf32>
    %51 = arith.maximumf %50, %49 : vector<4x128xf32>
    %c0_i32_36 = arith.constant 0 : i32
    %c4_i32_37 = arith.constant 4 : i32
    %52 = arith.addi %c0_i32_36, %c4_i32_37 : i32
    %c1_i32_38 = arith.constant 1 : i32
    %53 = scf.for %arg6 = %c0_i32_36 to %52 step %c1_i32_38 iter_args(%arg7 = %51) -> (vector<4x128xf32>)  : i32 {
      %54 = arith.addi %0, %arg6 : i32
      %c0_i32_40 = arith.constant 0 : i32
      %55 = arith.addi %54, %c0_i32_40 : i32
      %c0_41 = arith.constant 0 : index
      %56 = arith.index_cast %55 : i32 to index
      %c0_42 = arith.constant 0 : index
      %c0_43 = arith.constant 0 : index
      %57 = vector.load %arg2[%c0_41, %56, %c0_42, %c0_43] : memref<1x6x6x64xbf16, #tpu.memory_space<vmem>>, vector<1x1x4x64xbf16>
      %58 = vector.shape_cast %57 : vector<1x1x4x64xbf16> to vector<4x64xbf16>
      %c0_i32_44 = arith.constant 0 : i32
      %59 = arith.addi %54, %c0_i32_44 : i32
      %c0_45 = arith.constant 0 : index
      %60 = arith.index_cast %59 : i32 to index
      %c1_46 = arith.constant 1 : index
      %c0_47 = arith.constant 0 : index
      %61 = vector.load %arg2[%c0_45, %60, %c1_46, %c0_47] : memref<1x6x6x64xbf16, #tpu.memory_space<vmem>>, vector<1x1x4x64xbf16>
      %62 = vector.shape_cast %61 : vector<1x1x4x64xbf16> to vector<4x64xbf16>
      %c0_i32_48 = arith.constant 0 : i32
      %63 = arith.addi %54, %c0_i32_48 : i32
      %c0_49 = arith.constant 0 : index
      %64 = arith.index_cast %63 : i32 to index
      %c2_50 = arith.constant 2 : index
      %c0_51 = arith.constant 0 : index
      %65 = vector.load %arg2[%c0_49, %64, %c2_50, %c0_51] : memref<1x6x6x64xbf16, #tpu.memory_space<vmem>>, vector<1x1x4x64xbf16>
      %66 = vector.shape_cast %65 : vector<1x1x4x64xbf16> to vector<4x64xbf16>
      %c1_i32_52 = arith.constant 1 : i32
      %67 = arith.addi %54, %c1_i32_52 : i32
      %c0_53 = arith.constant 0 : index
      %68 = arith.index_cast %67 : i32 to index
      %c0_54 = arith.constant 0 : index
      %c0_55 = arith.constant 0 : index
      %69 = vector.load %arg2[%c0_53, %68, %c0_54, %c0_55] : memref<1x6x6x64xbf16, #tpu.memory_space<vmem>>, vector<1x1x4x64xbf16>
      %70 = vector.shape_cast %69 : vector<1x1x4x64xbf16> to vector<4x64xbf16>
      %c1_i32_56 = arith.constant 1 : i32
      %71 = arith.addi %54, %c1_i32_56 : i32
      %c0_57 = arith.constant 0 : index
      %72 = arith.index_cast %71 : i32 to index
      %c1_58 = arith.constant 1 : index
      %c0_59 = arith.constant 0 : index
      %73 = vector.load %arg2[%c0_57, %72, %c1_58, %c0_59] : memref<1x6x6x64xbf16, #tpu.memory_space<vmem>>, vector<1x1x4x64xbf16>
      %74 = vector.shape_cast %73 : vector<1x1x4x64xbf16> to vector<4x64xbf16>
      %c1_i32_60 = arith.constant 1 : i32
      %75 = arith.addi %54, %c1_i32_60 : i32
      %c0_61 = arith.constant 0 : index
      %76 = arith.index_cast %75 : i32 to index
      %c2_62 = arith.constant 2 : index
      %c0_63 = arith.constant 0 : index
      %77 = vector.load %arg2[%c0_61, %76, %c2_62, %c0_63] : memref<1x6x6x64xbf16, #tpu.memory_space<vmem>>, vector<1x1x4x64xbf16>
      %78 = vector.shape_cast %77 : vector<1x1x4x64xbf16> to vector<4x64xbf16>
      %c2_i32_64 = arith.constant 2 : i32
      %79 = arith.addi %54, %c2_i32_64 : i32
      %c0_65 = arith.constant 0 : index
      %80 = arith.index_cast %79 : i32 to index
      %c0_66 = arith.constant 0 : index
      %c0_67 = arith.constant 0 : index
      %81 = vector.load %arg2[%c0_65, %80, %c0_66, %c0_67] : memref<1x6x6x64xbf16, #tpu.memory_space<vmem>>, vector<1x1x4x64xbf16>
      %82 = vector.shape_cast %81 : vector<1x1x4x64xbf16> to vector<4x64xbf16>
      %c2_i32_68 = arith.constant 2 : i32
      %83 = arith.addi %54, %c2_i32_68 : i32
      %c0_69 = arith.constant 0 : index
      %84 = arith.index_cast %83 : i32 to index
      %c1_70 = arith.constant 1 : index
      %c0_71 = arith.constant 0 : index
      %85 = vector.load %arg2[%c0_69, %84, %c1_70, %c0_71] : memref<1x6x6x64xbf16, #tpu.memory_space<vmem>>, vector<1x1x4x64xbf16>
      %86 = vector.shape_cast %85 : vector<1x1x4x64xbf16> to vector<4x64xbf16>
      %c2_i32_72 = arith.constant 2 : i32
      %87 = arith.addi %54, %c2_i32_72 : i32
      %c0_73 = arith.constant 0 : index
      %88 = arith.index_cast %87 : i32 to index
      %c2_74 = arith.constant 2 : index
      %c0_75 = arith.constant 0 : index
      %89 = vector.load %arg2[%c0_73, %88, %c2_74, %c0_75] : memref<1x6x6x64xbf16, #tpu.memory_space<vmem>>, vector<1x1x4x64xbf16>
      %90 = vector.shape_cast %89 : vector<1x1x4x64xbf16> to vector<4x64xbf16>
      %91 = tpu.concatenate %58, %62, %66, %70, %74, %78, %82, %86, %90 in 1 : vector<4x64xbf16>, vector<4x64xbf16>, vector<4x64xbf16>, vector<4x64xbf16>, vector<4x64xbf16>, vector<4x64xbf16>, vector<4x64xbf16>, vector<4x64xbf16>, vector<4x64xbf16> -> vector<4x576xbf16>
      %c0_76 = arith.constant 0 : index
      %c0_77 = arith.constant 0 : index
      %92 = vector.load %arg3[%c0_76, %c0_77] : memref<576x512xbf16, #tpu.memory_space<vmem>>, vector<576x512xbf16>
      %cst_78 = arith.constant dense<0.000000e+00> : vector<4x512xf32>
      %93 = tpu.matmul %91, %92, %cst_78 {dimension_numbers = #tpu.dot_dimension_numbers<[1], [0], [0], [1], [0, 0, 1, 1], [], []>} : vector<4x576xbf16>, vector<576x512xbf16>, vector<4x512xf32> -> vector<4x512xf32>
      %94 = vector.extract_strided_slice %93 {offsets = [0, 0], sizes = [4, 128], strides = [1, 1]} : vector<4x512xf32> to vector<4x128xf32>
      %95 = vector.extract_strided_slice %93 {offsets = [0, 128], sizes = [4, 128], strides = [1, 1]} : vector<4x512xf32> to vector<4x128xf32>
      %96 = vector.extract_strided_slice %95 {offsets = [0, 0], sizes = [1, 128], strides = [1, 1]} : vector<4x128xf32> to vector<1x128xf32>
      %97 = vector.extract_strided_slice %95 {offsets = [0, 0], sizes = [3, 128], strides = [1, 1]} : vector<4x128xf32> to vector<3x128xf32>
      %98 = tpu.concatenate %96, %97 in 0 : vector<1x128xf32>, vector<3x128xf32> -> vector<4x128xf32>
      %99 = arith.maximumf %94, %95 : vector<4x128xf32>
      %100 = arith.maximumf %99, %98 : vector<4x128xf32>
      %101 = vector.extract_strided_slice %93 {offsets = [0, 256], sizes = [4, 128], strides = [1, 1]} : vector<4x512xf32> to vector<4x128xf32>
      %102 = vector.extract_strided_slice %93 {offsets = [0, 384], sizes = [4, 128], strides = [1, 1]} : vector<4x512xf32> to vector<4x128xf32>
      %103 = vector.extract_strided_slice %102 {offsets = [0, 0], sizes = [1, 128], strides = [1, 1]} : vector<4x128xf32> to vector<1x128xf32>
      %104 = vector.extract_strided_slice %102 {offsets = [0, 0], sizes = [3, 128], strides = [1, 1]} : vector<4x128xf32> to vector<3x128xf32>
      %105 = tpu.concatenate %103, %104 in 0 : vector<1x128xf32>, vector<3x128xf32> -> vector<4x128xf32>
      %106 = arith.maximumf %101, %102 : vector<4x128xf32>
      %107 = arith.maximumf %106, %105 : vector<4x128xf32>
      %108 = arith.maximumf %100, %107 : vector<4x128xf32>
      %109 = arith.maximumf %108, %arg7 : vector<4x128xf32>
      %110 = arith.addf %109, %3 : vector<4x128xf32>
      %111 = arith.truncf %110 : vector<4x128xf32> to vector<4x128xbf16>
      %c0_79 = arith.constant 0 : index
      %112 = arith.index_cast %arg6 : i32 to index
      %c0_80 = arith.constant 0 : index
      %c0_81 = arith.constant 0 : index
      %113 = vector.load %arg5[%c0_79, %112, %c0_80, %c0_81] : memref<1x4x4x128xbf16, #tpu.memory_space<vmem>>, vector<1x1x4x128xbf16>
      %114 = vector.shape_cast %113 : vector<1x1x4x128xbf16> to vector<4x128xbf16>
      %115 = vector.shape_cast %111 : vector<4x128xbf16> to vector<1x1x4x128xbf16>
      tpu.vector_store %arg5[%c0_79, %112, %c0_80, %c0_81], %115 {strides = array<i32>} : memref<1x4x4x128xbf16, #tpu.memory_space<vmem>>, vector<1x1x4x128xbf16>,
      scf.yield %107 : vector<4x128xf32>
    }
    %c4_i32_39 = arith.constant 4 : i32
    return
  }
  func.func @transform_0(%arg0: i32, %arg1: i32) -> (i32, i32, i32, i32) {
    %c0_i32 = arith.constant 0 : i32
    %c0_i32_0 = arith.constant 0 : i32
    %c0_i32_1 = arith.constant 0 : i32
    %c0_i32_2 = arith.constant 0 : i32
    return %arg0, %c0_i32, %c0_i32_0, %c0_i32_1 : i32, i32, i32, i32
  }
  func.func @transform_1(%arg0: i32, %arg1: i32) -> (i32, i32) {
    %c0_i32 = arith.constant 0 : i32
    %c0_i32_0 = arith.constant 0 : i32
    %c0_i32_1 = arith.constant 0 : i32
    return %c0_i32, %c0_i32_0 : i32, i32
  }
  func.func @transform_2(%arg0: i32, %arg1: i32) -> (i32, i32) {
    %c0_i32 = arith.constant 0 : i32
    %c0_i32_0 = arith.constant 0 : i32
    %c0_i32_1 = arith.constant 0 : i32
    return %c0_i32, %c0_i32_0 : i32, i32
  }
  func.func @transform_3(%arg0: i32, %arg1: i32) -> (i32, i32, i32, i32) {
    %c0_i32 = arith.constant 0 : i32
    %c0_i32_0 = arith.constant 0 : i32
    %c0_i32_1 = arith.constant 0 : i32
    return %arg0, %arg1, %c0_i32, %c0_i32_0 : i32, i32, i32, i32
  }
}

</mosaic_0001>

<llo_original>
// kernel: input_stem_forward.1
$region0: #{input_stem_forward.1}
  #allocation0 [shape = 'u32[]', space=smem, size = 0x4, offset = 0x4, fixed_abs, tag = 'smem constant byte address 0x4 - core index']
  #allocation1 [shape = 'u32[144,128]{1,0:T(1,128)}', space=vmem, size = 0x12000, scoped, tag = 'internal scratch']
  %s0 = inlined_call_operand.vmem [shape: bf16[2,6,6,64], index: 0, kind: input, shape index: {}]
  %s1 = inlined_call_operand.vmem [shape: bf16[576,512], index: 1, kind: input, shape index: {}]
  %s2 = inlined_call_operand.vmem [shape: f32[1,128], index: 2, kind: input, shape index: {}]
  %s3 = inlined_call_operand.vmem [shape: bf16[2,4,4,128], index: 3, kind: output, shape index: {}]
  %s4 = sld [smem:[#allocation0]]
  $region52: #{input_stem_forward.1} parent=0
    _
  %s6 = ssub.s32 1, %s4
  %s7 = scalar_select 0, %s6, %s4
  loop: start=0, step=1, limit=4
  $region2: #{input_stem_forward.1} parent=0 // loop_pre_header
    _
  $region3: #{input_stem_forward.1} parent=0 // loop_header
    %s9 = sphi 0, %s13
    %p10 = scmp.ge.s32.totalorder %s9, 4
    %s16 = sphi 0, %s28
    %s17 = sphi 0, %s24
    %s18 = sphi 0, %s16
    %s19 = sphi 0, %s17
    %s20 = sphi 0, %s18
    %s21 = sphi 0, %s19
    %s31 = sphi 0, %s33
    %s34 = sphi 0, %s31
    %s35 = sphi 0, %s34
    %s51 = sphi 0, %s35
    %s55 = sphi 0, %s55
    %s57 = sphi 0, %s55
    %s58 = sphi 0, %s57
    %s72 = sphi 0, %s58
    %s76 = sphi 0, %s76
    %s78 = sphi 0, %s76
    %s79 = sphi 0, %s78
    %s93 = sphi 0, %s79
    %s101 = sphi 0, %s103
    %s104 = sphi 0, %s101
    %s105 = sphi 0, %s104
    %s121 = sphi 0, %s105
  $region4: #{input_stem_forward.1} parent=0 // loop_header_branch
    %12 = sbr.rel (%p10) target = $region8
  $region5: #{input_stem_forward.1} parent=0 // loop_body
    %s14 = ssub.s32 %s9, 1
    %s15 = ssub.s32 %s9, 2
    %s22 = sadd.s32 1, %s17
    %p23 = scmp.ge.s32.totalorder %s22, 1
    %s24 = scalar_select %p23, 0, %s22
    %s25 = sadd.s32 1, %s16
    %s26 = scalar_select %p23, %s25, %s16
    %p27 = scmp.ge.s32.totalorder %s26, 2
    %s28 = scalar_select %p27, 0, %s26
    %s29 = ssub.s32 %s16, %s28
    %p30 = scmp.eq.s32.totalorder %s29, 0
    %s32 = sadd.s32 %s31, 1
    %s33 = scalar_select %p30, %s31, %s32
    %p36 = pneg %p30
    %p37 = scmp.eq.s32.totalorder %s9, 1
    %p38 = por %p36, %p37
    %p39 = scmp.ne.s32.totalorder %s31, %s34
    %p40 = scmp.eq.s32.totalorder %s9, 0
    %p41 = por %p39, %p40
    %p42 = scmp.ne.s32.totalorder %s31, %s34
    %p43 = scmp.eq.s32.totalorder %s14, 1
    %p44 = por %p42, %p43
    %p45 = scmp.ne.s32.totalorder %s34, %s35
    %p46 = scmp.eq.s32.totalorder %s14, 0
    %p47 = por %p45, %p46
    %p48 = scmp.ne.s32.totalorder %s34, %s35
    %p49 = scmp.eq.s32.totalorder %s15, 1
    %p50 = por %p48, %p49
    %p52 = scmp.ne.s32.totalorder %s35, %s51
    %p53 = scmp.eq.s32.totalorder %s15, 0
    %p54 = por %p52, %p53
    %s56 = sadd.s32 %s55, 1
    %p59 = scmp.eq.s32.totalorder %s9, 1
    %p60 = scmp.ne.s32.totalorder %s55, %s57
    %p61 = scmp.eq.s32.totalorder %s9, 0
    %p62 = por %p60, %p61
    %p63 = scmp.ne.s32.totalorder %s55, %s57
    %p64 = scmp.eq.s32.totalorder %s14, 1
    %p65 = por %p63, %p64
    %p66 = scmp.ne.s32.totalorder %s57, %s58
    %p67 = scmp.eq.s32.totalorder %s14, 0
    %p68 = por %p66, %p67
    %p69 = scmp.ne.s32.totalorder %s57, %s58
    %p70 = scmp.eq.s32.totalorder %s15, 1
    %p71 = por %p69, %p70
    %p73 = scmp.ne.s32.totalorder %s58, %s72
    %p74 = scmp.eq.s32.totalorder %s15, 0
    %p75 = por %p73, %p74
    %s77 = sadd.s32 %s76, 1
    %p80 = scmp.eq.s32.totalorder %s9, 1
    %p81 = scmp.ne.s32.totalorder %s76, %s78
    %p82 = scmp.eq.s32.totalorder %s9, 0
    %p83 = por %p81, %p82
    %p84 = scmp.ne.s32.totalorder %s76, %s78
    %p85 = scmp.eq.s32.totalorder %s14, 1
    %p86 = por %p84, %p85
    %p87 = scmp.ne.s32.totalorder %s78, %s79
    %p88 = scmp.eq.s32.totalorder %s14, 0
    %p89 = por %p87, %p88
    %p90 = scmp.ne.s32.totalorder %s78, %s79
    %p91 = scmp.eq.s32.totalorder %s15, 1
    %p92 = por %p90, %p91
    %p94 = scmp.ne.s32.totalorder %s79, %s93
    %p95 = scmp.eq.s32.totalorder %s15, 0
    %p96 = por %p94, %p95
    %s97 = ssub.s32 %s16, %s28
    %s98 = ssub.s32 %s17, %s24
    %s99 = sor.u32 %s97, %s98
    %p100 = scmp.eq.s32.totalorder %s99, 0
    %s102 = sadd.s32 %s101, 1
    %s103 = scalar_select %p100, %s101, %s102
    %p106 = pneg %p100
    %p107 = scmp.eq.s32.totalorder %s9, 1
    %p108 = por %p106, %p107
    %p109 = scmp.ne.s32.totalorder %s101, %s104
    %p110 = scmp.eq.s32.totalorder %s9, 0
    %p111 = por %p109, %p110
    %p112 = scmp.ne.s32.totalorder %s101, %s104
    %p113 = scmp.eq.s32.totalorder %s14, 1
    %p114 = por %p112, %p113
    %p115 = scmp.ne.s32.totalorder %s104, %s105
    %p116 = scmp.eq.s32.totalorder %s14, 0
    %p117 = por %p115, %p116
    %p118 = scmp.ne.s32.totalorder %s104, %s105
    %p119 = scmp.eq.s32.totalorder %s15, 1
    %p120 = por %p118, %p119
    %p122 = scmp.ne.s32.totalorder %s105, %s121
    %p123 = scmp.eq.s32.totalorder %s15, 0
    %p124 = por %p122, %p123
    %p125 = scmp.le.s32.totalorder 1, %s9
    %p126 = scmp.lt.s32.totalorder %s9, 3
    %p127 = pnand %p125, %p126
    %p128 = pneg %p127
    // Predicated region
    $region9: #{input_stem_forward.1} parent=5 // pred_check
      _
    $region10: #{input_stem_forward.1} parent=5 // pred_check_branch
      %130 = sbr.rel (%p127) target = $region12
    $region11: #{input_stem_forward.1} parent=5 // pred_region
      %s131 = ssub.s32 %s9, 1
      // Predicated region
      $region13: #{input_stem_forward.1} parent=11 // pred_check
        %p132 = pneg %p68
      $region14: #{input_stem_forward.1} parent=11 // pred_check_branch
        %134 = sbr.rel (%p132) target = $region16
      $region15: #{input_stem_forward.1} parent=11 // pred_region
        _
      $region16: #{input_stem_forward.1} parent=11 // pred_fallthru
        _
      // Predicated region
      $region17: #{input_stem_forward.1} parent=11 // pred_check
        %p135 = pneg %p89
      $region18: #{input_stem_forward.1} parent=11 // pred_check_branch
        %137 = sbr.rel (%p135) target = $region20
      $region19: #{input_stem_forward.1} parent=11 // pred_region
        _
      $region20: #{input_stem_forward.1} parent=11 // pred_fallthru
        _
    $region12: #{input_stem_forward.1} parent=5 // pred_fallthru
      _
    %p138 = scmp.lt.s32.totalorder %s9, 2
    // Predicated region
    $region21: #{input_stem_forward.1} parent=5 // pred_check
      %p139 = pneg %p138
    $region22: #{input_stem_forward.1} parent=5 // pred_check_branch
      %141 = sbr.rel (%p139) target = $region24
    $region23: #{input_stem_forward.1} parent=5 // pred_region
      // Predicated region
      $region25: #{input_stem_forward.1} parent=23 // pred_check
        %p142 = pneg %p41
      $region26: #{input_stem_forward.1} parent=23 // pred_check_branch
        %144 = sbr.rel (%p142) target = $region28
      $region27: #{input_stem_forward.1} parent=23 // pred_region
        %p145 = scmp.lt.s32.totalorder %s16, 1
        %s146 = scalar_select %p145, %s16, 1
        %s147 = smul.addr %s146, 6
        %s148 = smul.addr %s147, 4
        %s149 = scalar_lea.vmem %s0, %s148
      $region28: #{input_stem_forward.1} parent=23 // pred_fallthru
        _
    $region24: #{input_stem_forward.1} parent=5 // pred_fallthru
      _
    %p150 = scmp.le.s32.totalorder 1, %s9
    %p151 = scmp.lt.s32.totalorder %s9, 3
    %p152 = pnand %p150, %p151
    %p153 = pneg %p152
    // Predicated region
    $region29: #{input_stem_forward.1} parent=5 // pred_check
      _
    $region30: #{input_stem_forward.1} parent=5 // pred_check_branch
      %155 = sbr.rel (%p152) target = $region32
    $region31: #{input_stem_forward.1} parent=5 // pred_region
      %s156 = ssub.s32 %s9, 1
      %p157 = scmp.lt.s32.totalorder %s18, 1
      %s158 = scalar_select %p157, %s18, 1
      %s159 = smul.addr %s158, 6
      %s160 = smul.addr %s159, 4
      %s161 = scalar_lea.vmem %s0, %s160
      %p162 = pneg %p47
      %p163 = pneg %p44
      %p164 = pneg %p68
      %p165 = pneg %p65
      %p166 = pneg %p89
      %p167 = pneg %p86
      %p168 = pneg %p117
      %p169 = pneg %p114
      %s170 = smul.u32 4, %s19
      %p171 = scmp.lt.s32.totalorder %s18, 1
      %s172 = scalar_select %p171, %s18, 1
      %p173 = scmp.lt.s32.totalorder %s170, 3
      %s174 = scalar_select %p173, %s170, 3
      %s175 = smul.addr %s172, 4
      %s176 = sadd.s32 %s174, %s175
      %s177 = smul.addr %s176, 2
      %s178 = scalar_lea.vmem %s3, %s177
      %p179 = scmp.lt.s32.totalorder %s18, 1
      %s180 = scalar_select %p179, %s18, 1
      %s181 = smul.addr %s180, 6
      %s182 = smul.addr %s181, 4
      %s183 = scalar_lea.vmem %s0, %s182
      %s184 = smul.u32 4, %s19
      %p185 = scmp.lt.s32.totalorder %s18, 1
      %s186 = scalar_select %p185, %s18, 1
      %p187 = scmp.lt.s32.totalorder %s184, 3
      %s188 = scalar_select %p187, %s184, 3
      %s189 = smul.addr %s186, 4
      %s190 = sadd.s32 %s188, %s189
      %s191 = smul.addr %s190, 2
      %s192 = scalar_lea.vmem %s3, %s191
      %s193 = smul.u32 4, %s19
      %s195 = smul.u32 %s19, 4
      %v196 = vld [vmem:[%s2] sm:$0x1]
      %v198 = vlaneseq
      %v199 = vshrl.u32 %v198, 7
      %v200 = vsub.s32 0, %v199
      %v201 = vrot.slane %v196, %v200
      %s203 = ssub.s32 %s195, 1
      %p204 = scmp.gt.s32.totalorder %s203, 0
      %s205 = scalar_select %p204, %s203, 0
      %s206 = smul.addr %s205, 4
      %s207 = scalar_lea.vmem %s183, %s206
      %v208 = vld [vmem:[%s207] sm:$0x3]
      %v209 = vld [vmem:[%s207] sm:$0x7]
      %v210 = vld [vmem:[%s207] sm:$0x6]
      %s211 = sadd.s32 %s205, 1
      %s212 = smul.addr %s211, 4
      %s213 = scalar_lea.vmem %s183, %s212
      %v214 = vld [vmem:[%s213] sm:$0x3]
      %v215 = vld [vmem:[%s213] sm:$0x7]
      %v216 = vld [vmem:[%s213] sm:$0x6]
      %s217 = sadd.s32 %s205, 2
      %s218 = smul.addr %s217, 4
      %s219 = scalar_lea.vmem %s183, %s218
      %v220 = vld [vmem:[%s219] sm:$0x3]
      %v221 = vld [vmem:[%s219] sm:$0x7]
      %v222 = vld [vmem:[%s219] sm:$0x6]
      %v224 = vunpack.c.l.b16 %v209
      %v225 = vpack.c.b16 %v224, %v224
      %v227 = vshrl.u32 %v225, 16
      %v229 = vshll.u32 %v225, 16
      %v231 = vrot.slane %v229, 1
      %v232 = vor.u32 %v227, %v231
      %233 = vrot.lane.b32.xlu0 %v232, 64
      %v234 = vpop.permute.xlu0 %233
      %v236 = vunpack.c.l.b16 %v210
      %v237 = vpack.c.b16 %v236, %v236
      %v238 = vrot.slane %v237, 1
      %v240 = vunpack.c.l.b16 %v214
      %v241 = vpack.c.b16 %v240, %v240
      %242 = vrot.lane.b32.xlu0 %v241, 64
      %v243 = vpop.permute.xlu0 %242
      %v245 = vunpack.c.l.b16 %v215
      %v246 = vpack.c.b16 %v245, %v245
      %v248 = vshrl.u32 %v246, 16
      %v250 = vshll.u32 %v246, 16
      %v252 = vrot.slane %v250, 1
      %v253 = vor.u32 %v248, %v252
      %v255 = vunpack.c.l.b16 %v216
      %v256 = vpack.c.b16 %v255, %v255
      %v257 = vrot.slane %v256, 1
      %258 = vrot.lane.b32.xlu0 %v257, 64
      %v259 = vpop.permute.xlu0 %258
      %v261 = vunpack.c.l.b16 %v221
      %v262 = vpack.c.b16 %v261, %v261
      %v264 = vshrl.u32 %v262, 16
      %v266 = vshll.u32 %v262, 16
      %v268 = vrot.slane %v266, 1
      %v269 = vor.u32 %v264, %v268
      %270 = vrot.lane.b32.xlu0 %v269, 64
      %v271 = vpop.permute.xlu0 %270
      %v273 = vunpack.c.l.b16 %v222
      %v274 = vpack.c.b16 %v273, %v273
      %v275 = vrot.slane %v274, 1
      %vm276 = vcmask 523264
      %v279 = vsel %vm276, %v208, %v234
      %v283 = vsel %vm276, %v238, %v243
      %v287 = vsel %vm276, %v253, %v259
      %v291 = vsel %vm276, %v220, %v271
      %v293 = vld [vmem:[%s1 + $0x8] sm:$0xff]
      %v294 = vld [vmem:[%s1 + $0x18] sm:$0xff]
      %v295 = vld [vmem:[%s1 + $0x28] sm:$0xff]
      %v296 = vld [vmem:[%s1 + $0x38] sm:$0xff]
      %v297 = vld [vmem:[%s1 + $0x48] sm:$0xff]
      %v298 = vld [vmem:[%s1 + $0x58] sm:$0xff]
      %v299 = vld [vmem:[%s1 + $0x68] sm:$0xff]
      %v300 = vld [vmem:[%s1 + $0x78] sm:$0xff]
      %v301 = vld [vmem:[%s1 + $0x88] sm:$0xff]
      %v302 = vld [vmem:[%s1 + $0x98] sm:$0xff]
      %v303 = vld [vmem:[%s1 + $0xa8] sm:$0xff]
      %v304 = vld [vmem:[%s1 + $0xb8] sm:$0xff]
      %v305 = vld [vmem:[%s1 + $0xc8] sm:$0xff]
      %v306 = vld [vmem:[%s1 + $0xd8] sm:$0xff]
      %v307 = vld [vmem:[%s1 + $0xe8] sm:$0xff]
      %v308 = vld [vmem:[%s1 + $0xf8] sm:$0xff]
      %v309 = vld [vmem:[%s1 + $0x108] sm:$0xff]
      %v310 = vld [vmem:[%s1 + $0x118] sm:$0xff]
      %v311 = vld [vmem:[%s1 + $0x128] sm:$0xff]
      %v312 = vld [vmem:[%s1 + $0x138] sm:$0xff]
      %v313 = vld [vmem:[%s1 + $0x148] sm:$0xff]
      %v314 = vld [vmem:[%s1 + $0x158] sm:$0xff]
      %v315 = vld [vmem:[%s1 + $0x168] sm:$0xff]
      %v316 = vld [vmem:[%s1 + $0x178] sm:$0xff]
      %v317 = vld [vmem:[%s1 + $0x188] sm:$0xff]
      %v318 = vld [vmem:[%s1 + $0x198] sm:$0xff]
      %v319 = vld [vmem:[%s1 + $0x1a8] sm:$0xff]
      %v320 = vld [vmem:[%s1 + $0x1b8] sm:$0xff]
      %v321 = vld [vmem:[%s1 + $0x1c8] sm:$0xff]
      %v322 = vld [vmem:[%s1 + $0x1d8] sm:$0xff]
      %v323 = vld [vmem:[%s1 + $0x1e8] sm:$0xff]
      %v324 = vld [vmem:[%s1 + $0x1f8] sm:$0xff]
      %v325 = vld [vmem:[%s1 + $0x208] sm:$0xff]
      %v326 = vld [vmem:[%s1 + $0x218] sm:$0xff]
      %v327 = vld [vmem:[%s1 + $0x228] sm:$0xff]
      %v328 = vld [vmem:[%s1 + $0x238] sm:$0xff]
      %v329 = vld [vmem:[%s1 + $0x248] sm:$0xff]
      %v330 = vld [vmem:[%s1 + $0x258] sm:$0xff]
      %v331 = vld [vmem:[%s1 + $0x268] sm:$0xff]
      %v332 = vld [vmem:[%s1 + $0x278] sm:$0xff]
      %v333 = vld [vmem:[%s1 + $0x288] sm:$0xff]
      %v334 = vld [vmem:[%s1 + $0x298] sm:$0xff]
      %v335 = vld [vmem:[%s1 + $0x2a8] sm:$0xff]
      %v336 = vld [vmem:[%s1 + $0x2b8] sm:$0xff]
      %v337 = vld [vmem:[%s1 + $0x2c8] sm:$0xff]
      %v338 = vld [vmem:[%s1 + $0x2d8] sm:$0xff]
      %v339 = vld [vmem:[%s1 + $0x2e8] sm:$0xff]
      %v340 = vld [vmem:[%s1 + $0x2f8] sm:$0xff]
      %v341 = vld [vmem:[%s1 + $0x308] sm:$0xff]
      %v342 = vld [vmem:[%s1 + $0x318] sm:$0xff]
      %v343 = vld [vmem:[%s1 + $0x328] sm:$0xff]
      %v344 = vld [vmem:[%s1 + $0x338] sm:$0xff]
      %v345 = vld [vmem:[%s1 + $0x348] sm:$0xff]
      %v346 = vld [vmem:[%s1 + $0x358] sm:$0xff]
      %v347 = vld [vmem:[%s1 + $0x368] sm:$0xff]
      %v348 = vld [vmem:[%s1 + $0x378] sm:$0xff]
      %v349 = vld [vmem:[%s1 + $0x388] sm:$0xff]
      %v350 = vld [vmem:[%s1 + $0x398] sm:$0xff]
      %v351 = vld [vmem:[%s1 + $0x3a8] sm:$0xff]
      %v352 = vld [vmem:[%s1 + $0x3b8] sm:$0xff]
      %v353 = vld [vmem:[%s1 + $0x3c8] sm:$0xff]
      %v354 = vld [vmem:[%s1 + $0x3d8] sm:$0xff]
      %v355 = vld [vmem:[%s1 + $0x3e8] sm:$0xff]
      %v356 = vld [vmem:[%s1 + $0x3f8] sm:$0xff]
      %v357 = vld [vmem:[%s1 + $0x408] sm:$0xff]
      %v358 = vld [vmem:[%s1 + $0x418] sm:$0xff]
      %v359 = vld [vmem:[%s1 + $0x428] sm:$0xff]
      %v360 = vld [vmem:[%s1 + $0x438] sm:$0xff]
      %v361 = vld [vmem:[%s1 + $0x448] sm:$0xff]
      %v362 = vld [vmem:[%s1 + $0x458] sm:$0xff]
      %v363 = vld [vmem:[%s1 + $0x468] sm:$0xff]
      %v364 = vld [vmem:[%s1 + $0x478] sm:$0xff]
      %v437 = vunpack.c.l.b16 %v293
      %v438 = vunpack.c.h.b16 %v293
      %v439 = vunpack.c.l.b16 %v294
      %v440 = vunpack.c.h.b16 %v294
      %v441 = vunpack.c.l.b16 %v295
      %v442 = vunpack.c.h.b16 %v295
      %v443 = vunpack.c.l.b16 %v296
      %v444 = vunpack.c.h.b16 %v296
      %v445 = vunpack.c.l.b16 %v297
      %v446 = vunpack.c.h.b16 %v297
      %v447 = vunpack.c.l.b16 %v298
      %v448 = vunpack.c.h.b16 %v298
      %v449 = vunpack.c.l.b16 %v299
      %v450 = vunpack.c.h.b16 %v299
      %v451 = vunpack.c.l.b16 %v300
      %v452 = vunpack.c.h.b16 %v300
      %v453 = vunpack.c.l.b16 %v301
      %v454 = vunpack.c.h.b16 %v301
      %v455 = vunpack.c.l.b16 %v302
      %v456 = vunpack.c.h.b16 %v302
      %v457 = vunpack.c.l.b16 %v303
      %v458 = vunpack.c.h.b16 %v303
      %v459 = vunpack.c.l.b16 %v304
      %v460 = vunpack.c.h.b16 %v304
      %v461 = vunpack.c.l.b16 %v305
      %v462 = vunpack.c.h.b16 %v305
      %v463 = vunpack.c.l.b16 %v306
      %v464 = vunpack.c.h.b16 %v306
      %v465 = vunpack.c.l.b16 %v307
      %v466 = vunpack.c.h.b16 %v307
      %v467 = vunpack.c.l.b16 %v308
      %v468 = vunpack.c.h.b16 %v308
      %v469 = vunpack.c.l.b16 %v309
      %v470 = vunpack.c.h.b16 %v309
      %v471 = vunpack.c.l.b16 %v310
      %v472 = vunpack.c.h.b16 %v310
      %v473 = vunpack.c.l.b16 %v311
      %v474 = vunpack.c.h.b16 %v311
      %v475 = vunpack.c.l.b16 %v312
      %v476 = vunpack.c.h.b16 %v312
      %v477 = vunpack.c.l.b16 %v313
      %v478 = vunpack.c.h.b16 %v313
      %v479 = vunpack.c.l.b16 %v314
      %v480 = vunpack.c.h.b16 %v314
      %v481 = vunpack.c.l.b16 %v315
      %v482 = vunpack.c.h.b16 %v315
      %v483 = vunpack.c.l.b16 %v316
      %v484 = vunpack.c.h.b16 %v316
      %v485 = vunpack.c.l.b16 %v317
      %v486 = vunpack.c.h.b16 %v317
      %v487 = vunpack.c.l.b16 %v318
      %v488 = vunpack.c.h.b16 %v318
      %v489 = vunpack.c.l.b16 %v319
      %v490 = vunpack.c.h.b16 %v319
      %v491 = vunpack.c.l.b16 %v320
      %v492 = vunpack.c.h.b16 %v320
      %v493 = vunpack.c.l.b16 %v321
      %v494 = vunpack.c.h.b16 %v321
      %v495 = vunpack.c.l.b16 %v322
      %v496 = vunpack.c.h.b16 %v322
      %v497 = vunpack.c.l.b16 %v323
      %v498 = vunpack.c.h.b16 %v323
      %v499 = vunpack.c.l.b16 %v324
      %v500 = vunpack.c.h.b16 %v324
      %v501 = vunpack.c.l.b16 %v325
      %v502 = vunpack.c.h.b16 %v325
      %v503 = vunpack.c.l.b16 %v326
      %v504 = vunpack.c.h.b16 %v326
      %v505 = vunpack.c.l.b16 %v327
      %v506 = vunpack.c.h.b16 %v327
      %v507 = vunpack.c.l.b16 %v328
      %v508 = vunpack.c.h.b16 %v328
      %v509 = vunpack.c.l.b16 %v329
      %v510 = vunpack.c.h.b16 %v329
      %v511 = vunpack.c.l.b16 %v330
      %v512 = vunpack.c.h.b16 %v330
      %v513 = vunpack.c.l.b16 %v331
      %v514 = vunpack.c.h.b16 %v331
      %v515 = vunpack.c.l.b16 %v332
      %v516 = vunpack.c.h.b16 %v332
      %v517 = vunpack.c.l.b16 %v333
      %v518 = vunpack.c.h.b16 %v333
      %v519 = vunpack.c.l.b16 %v334
      %v520 = vunpack.c.h.b16 %v334
      %v521 = vunpack.c.l.b16 %v335
      %v522 = vunpack.c.h.b16 %v335
      %v523 = vunpack.c.l.b16 %v336
      %v524 = vunpack.c.h.b16 %v336
      %v525 = vunpack.c.l.b16 %v337
      %v526 = vunpack.c.h.b16 %v337
      %v527 = vunpack.c.l.b16 %v338
      %v528 = vunpack.c.h.b16 %v338
      %v529 = vunpack.c.l.b16 %v339
      %v530 = vunpack.c.h.b16 %v339
      %v531 = vunpack.c.l.b16 %v340
      %v532 = vunpack.c.h.b16 %v340
      %v533 = vunpack.c.l.b16 %v341
      %v534 = vunpack.c.h.b16 %v341
      %v535 = vunpack.c.l.b16 %v342
      %v536 = vunpack.c.h.b16 %v342
      %v537 = vunpack.c.l.b16 %v343
      %v538 = vunpack.c.h.b16 %v343
      %v539 = vunpack.c.l.b16 %v344
      %v540 = vunpack.c.h.b16 %v344
      %v541 = vunpack.c.l.b16 %v345
      %v542 = vunpack.c.h.b16 %v345
      %v543 = vunpack.c.l.b16 %v346
      %v544 = vunpack.c.h.b16 %v346
      %v545 = vunpack.c.l.b16 %v347
      %v546 = vunpack.c.h.b16 %v347
      %v547 = vunpack.c.l.b16 %v348
      %v548 = vunpack.c.h.b16 %v348
      %v549 = vunpack.c.l.b16 %v349
      %v550 = vunpack.c.h.b16 %v349
      %v551 = vunpack.c.l.b16 %v350
      %v552 = vunpack.c.h.b16 %v350
      %v553 = vunpack.c.l.b16 %v351
      %v554 = vunpack.c.h.b16 %v351
      %v555 = vunpack.c.l.b16 %v352
      %v556 = vunpack.c.h.b16 %v352
      %v557 = vunpack.c.l.b16 %v353
      %v558 = vunpack.c.h.b16 %v353
      %v559 = vunpack.c.l.b16 %v354
      %v560 = vunpack.c.h.b16 %v354
      %v561 = vunpack.c.l.b16 %v355
      %v562 = vunpack.c.h.b16 %v355
      %v563 = vunpack.c.l.b16 %v356
      %v564 = vunpack.c.h.b16 %v356
      %v565 = vunpack.c.l.b16 %v357
      %v566 = vunpack.c.h.b16 %v357
      %v567 = vunpack.c.l.b16 %v358
      %v568 = vunpack.c.h.b16 %v358
      %v569 = vunpack.c.l.b16 %v359
      %v570 = vunpack.c.h.b16 %v359
      %v571 = vunpack.c.l.b16 %v360
      %v572 = vunpack.c.h.b16 %v360
      %v573 = vunpack.c.l.b16 %v361
      %v574 = vunpack.c.h.b16 %v361
      %v575 = vunpack.c.l.b16 %v362
      %v576 = vunpack.c.h.b16 %v362
      %v577 = vunpack.c.l.b16 %v363
      %v578 = vunpack.c.h.b16 %v363
      %v579 = vunpack.c.l.b16 %v364
      %v580 = vunpack.c.h.b16 %v364
      %v581 = vpack.c.b16 %v439, %v437
      %v582 = vpack.c.b16 %v440, %v438
      %v583 = vpack.c.b16 %v443, %v441
      %v584 = vpack.c.b16 %v444, %v442
      %v585 = vpack.c.b16 %v447, %v445
      %v586 = vpack.c.b16 %v448, %v446
      %v587 = vpack.c.b16 %v451, %v449
      %v588 = vpack.c.b16 %v452, %v450
      %v589 = vpack.c.b16 %v455, %v453
      %v590 = vpack.c.b16 %v456, %v454
      %v591 = vpack.c.b16 %v459, %v457
      %v592 = vpack.c.b16 %v460, %v458
      %v593 = vpack.c.b16 %v463, %v461
      %v594 = vpack.c.b16 %v464, %v462
      %v595 = vpack.c.b16 %v467, %v465
      %v596 = vpack.c.b16 %v468, %v466
      %v597 = vpack.c.b16 %v471, %v469
      %v598 = vpack.c.b16 %v472, %v470
      %v599 = vpack.c.b16 %v475, %v473
      %v600 = vpack.c.b16 %v476, %v474
      %v601 = vpack.c.b16 %v479, %v477
      %v602 = vpack.c.b16 %v480, %v478
      %v603 = vpack.c.b16 %v483, %v481
      %v604 = vpack.c.b16 %v484, %v482
      %v605 = vpack.c.b16 %v487, %v485
      %v606 = vpack.c.b16 %v488, %v486
      %v607 = vpack.c.b16 %v491, %v489
      %v608 = vpack.c.b16 %v492, %v490
      %v609 = vpack.c.b16 %v495, %v493
      %v610 = vpack.c.b16 %v496, %v494
      %v611 = vpack.c.b16 %v499, %v497
      %v612 = vpack.c.b16 %v500, %v498
      %v613 = vpack.c.b16 %v503, %v501
      %v614 = vpack.c.b16 %v504, %v502
      %v615 = vpack.c.b16 %v507, %v505
      %v616 = vpack.c.b16 %v508, %v506
      %v617 = vpack.c.b16 %v511, %v509
      %v618 = vpack.c.b16 %v512, %v510
      %v619 = vpack.c.b16 %v515, %v513
      %v620 = vpack.c.b16 %v516, %v514
      %v621 = vpack.c.b16 %v519, %v517
      %v622 = vpack.c.b16 %v520, %v518
      %v623 = vpack.c.b16 %v523, %v521
      %v624 = vpack.c.b16 %v524, %v522
      %v625 = vpack.c.b16 %v527, %v525
      %v626 = vpack.c.b16 %v528, %v526
      %v627 = vpack.c.b16 %v531, %v529
      %v628 = vpack.c.b16 %v532, %v530
      %v629 = vpack.c.b16 %v535, %v533
      %v630 = vpack.c.b16 %v536, %v534
      %v631 = vpack.c.b16 %v539, %v537
      %v632 = vpack.c.b16 %v540, %v538
      %v633 = vpack.c.b16 %v543, %v541
      %v634 = vpack.c.b16 %v544, %v542
      %v635 = vpack.c.b16 %v547, %v545
      %v636 = vpack.c.b16 %v548, %v546
      %v637 = vpack.c.b16 %v551, %v549
      %v638 = vpack.c.b16 %v552, %v550
      %v639 = vpack.c.b16 %v555, %v553
      %v640 = vpack.c.b16 %v556, %v554
      %v641 = vpack.c.b16 %v559, %v557
      %v642 = vpack.c.b16 %v560, %v558
      %v643 = vpack.c.b16 %v563, %v561
      %v644 = vpack.c.b16 %v564, %v562
      %v645 = vpack.c.b16 %v567, %v565
      %v646 = vpack.c.b16 %v568, %v566
      %v647 = vpack.c.b16 %v571, %v569
      %v648 = vpack.c.b16 %v572, %v570
      %v649 = vpack.c.b16 %v575, %v573
      %v650 = vpack.c.b16 %v576, %v574
      %v651 = vpack.c.b16 %v579, %v577
      %v652 = vpack.c.b16 %v580, %v578
      %v726 = vsel %vm276, %v275, 0
      %728 = vmatprep.subr.bf16.mxu0 %v582
      %729 = vmatpush1.bf16.msra.mxu0 %v581
      %730 = vmatprep.subr.bf16.mxu0 %v584
      %731 = vmatpush1.bf16.msra.mxu0 %v583
      %732 = vmatprep.subr.bf16.mxu0 %v586
      %733 = vmatpush1.bf16.msra.mxu0 %v585
      %734 = vmatprep.subr.bf16.mxu0 %v588
      %735 = vmatpush1.bf16.msra.mxu0 %v587
      %736 = vmatprep.subr.bf16.mxu0 %v590
      %737 = vmatpush1.bf16.msra.mxu0 %v589
      %738 = vmatprep.subr.bf16.mxu0 %v592
      %739 = vmatpush1.bf16.msra.mxu0 %v591
      %740 = vmatprep.subr.bf16.mxu0 %v594
      %741 = vmatpush1.bf16.msra.mxu0 %v593
      %742 = vmatprep.subr.bf16.mxu0 %v596
      %743 = vmatpush1.bf16.msra.mxu0 %v595
      %744 = vmatprep.subr.bf16.mxu0 %v598
      %745 = vmatpush1.bf16.msra.mxu0 %v597
      %746 = vmatprep.subr.bf16.mxu0 %v600
      %747 = vmatpush1.bf16.msra.mxu0 %v599
      %748 = vmatprep.subr.bf16.mxu0 %v602
      %749 = vmatpush1.bf16.msra.mxu0 %v601
      %750 = vmatprep.subr.bf16.mxu0 %v604
      %751 = vmatpush1.bf16.msra.mxu0 %v603
      %752 = vmatprep.subr.bf16.mxu0 %v606
      %753 = vmatpush1.bf16.msra.mxu0 %v605
      %754 = vmatprep.subr.bf16.mxu0 %v608
      %755 = vmatpush1.bf16.msra.mxu0 %v607
      %756 = vmatprep.subr.bf16.mxu0 %v610
      %757 = vmatpush1.bf16.msra.mxu0 %v609
      %758 = vmatprep.subr.bf16.mxu0 %v612
      %759 = vmatpush1.bf16.msra.mxu0 %v611
      %760 = vmatprep.mubr.bf16.mxu0 %v283
      %761 = vmatmul.mubr.bf16.gmra.mrb[0].mxu0 %v279
      %v762 = vpop.f32.mrb[0].mxu0
      %v763 = vadd.f32 0.0, %v762
      %v764 = vpop.f32.mrb[0].mxu0
      %v765 = vadd.f32 0.0, %v764
      %v766 = vpop.f32.mrb[0].mxu0
      %v767 = vpop.f32.mrb[0].mxu0
      %768 = vdwg.mxu0
      %769 = vmatprep.subr.bf16.mxu0 %v614
      %770 = vmatpush1.bf16.msra.mxu0 %v613
      %771 = vmatprep.subr.bf16.mxu0 %v616
      %772 = vmatpush1.bf16.msra.mxu0 %v615
      %773 = vmatprep.subr.bf16.mxu0 %v618
      %774 = vmatpush1.bf16.msra.mxu0 %v617
      %775 = vmatprep.subr.bf16.mxu0 %v620
      %776 = vmatpush1.bf16.msra.mxu0 %v619
      %777 = vmatprep.subr.bf16.mxu0 %v622
      %778 = vmatpush1.bf16.msra.mxu0 %v621
      %779 = vmatprep.subr.bf16.mxu0 %v624
      %780 = vmatpush1.bf16.msra.mxu0 %v623
      %781 = vmatprep.subr.bf16.mxu0 %v626
      %782 = vmatpush1.bf16.msra.mxu0 %v625
      %783 = vmatprep.subr.bf16.mxu0 %v628
      %784 = vmatpush1.bf16.msra.mxu0 %v627
      %785 = vmatprep.subr.bf16.mxu0 %v630
      %786 = vmatpush1.bf16.msra.mxu0 %v629
      %787 = vmatprep.subr.bf16.mxu0 %v632
      %788 = vmatpush1.bf16.msra.mxu0 %v631
      %789 = vmatprep.subr.bf16.mxu0 %v634
      %790 = vmatpush1.bf16.msra.mxu0 %v633
      %791 = vmatprep.subr.bf16.mxu0 %v636
      %792 = vmatpush1.bf16.msra.mxu0 %v635
      %793 = vmatprep.subr.bf16.mxu0 %v638
      %794 = vmatpush1.bf16.msra.mxu0 %v637
      %795 = vmatprep.subr.bf16.mxu0 %v640
      %796 = vmatpush1.bf16.msra.mxu0 %v639
      %797 = vmatprep.subr.bf16.mxu0 %v642
      %798 = vmatpush1.bf16.msra.mxu0 %v641
      %799 = vmatprep.subr.bf16.mxu0 %v644
      %800 = vmatpush1.bf16.msra.mxu0 %v643
      %801 = vmatprep.mubr.bf16.mxu0 %v291
      %802 = vmatmul.mubr.bf16.gmra.mrb[0].mxu0 %v287
      %v803 = vpop.f32.mrb[0].mxu0
      %v804 = vadd.f32 %v763, %v803
      %v805 = vpop.f32.mrb[0].mxu0
      %v806 = vadd.f32 %v765, %v805
      %v807 = vpop.f32.mrb[0].mxu0
      %v808 = vpop.f32.mrb[0].mxu0
      %809 = vdwg.mxu0
      %810 = vmatprep.subr.bf16.mxu0 %v646
      %811 = vmatpush1.bf16.msra.mxu0 %v645
      %812 = vmatprep.subr.bf16.mxu0 %v648
      %813 = vmatpush1.bf16.msra.mxu0 %v647
      %814 = vmatprep.subr.bf16.mxu0 %v650
      %815 = vmatpush1.bf16.msra.mxu0 %v649
      %816 = vmatprep.subr.bf16.mxu0 %v652
      %817 = vmatpush1.bf16.msra.mxu0 %v651
      %818 = vmatprep.subr.bf16.mxu0 0
      %819 = vmatpush1.bf16.msra.mxu0 0
      %820 = vmatprep.subr.bf16.mxu0 0
      %821 = vmatpush1.bf16.msra.mxu0 0
      %822 = vmatprep.subr.bf16.mxu0 0
      %823 = vmatpush1.bf16.msra.mxu0 0
      %824 = vmatprep.subr.bf16.mxu0 0
      %825 = vmatpush1.bf16.msra.mxu0 0
      %826 = vmatprep.subr.bf16.mxu0 0
      %827 = vmatpush1.bf16.msra.mxu0 0
      %828 = vmatprep.subr.bf16.mxu0 0
      %829 = vmatpush1.bf16.msra.mxu0 0
      %830 = vmatprep.subr.bf16.mxu0 0
      %831 = vmatpush1.bf16.msra.mxu0 0
      %832 = vmatprep.subr.bf16.mxu0 0
      %833 = vmatpush1.bf16.msra.mxu0 0
      %834 = vmatprep.subr.bf16.mxu0 0
      %835 = vmatpush1.bf16.msra.mxu0 0
      %836 = vmatprep.subr.bf16.mxu0 0
      %837 = vmatpush1.bf16.msra.mxu0 0
      %838 = vmatprep.subr.bf16.mxu0 0
      %839 = vmatpush1.bf16.msra.mxu0 0
      %840 = vmatprep.subr.bf16.mxu0 0
      %841 = vmatpush1.bf16.msra.mxu0 0
      %842 = vmatprep.mubr.bf16.mxu0 0
      %843 = vmatmul.mubr.bf16.gmra.mrb[0].mxu0 %v726
      %v844 = vpop.f32.mrb[0].mxu0
      %v845 = vadd.f32 %v804, %v844
      %v846 = vpop.f32.mrb[0].mxu0
      %v847 = vadd.f32 %v806, %v846
      %v848 = vpop.f32.mrb[0].mxu0
      %v849 = vpop.f32.mrb[0].mxu0
      %850 = vdwg.mxu0
      %v852 = vrot.slane %v847, 7
      %vm854 = vcmask 1040384
      %v855 = vsel %vm854, %v847, %v852
      %v856 = vmax.f32 %v845, %v847
      %v857 = vmax.f32 %v856, %v855
      loop: start=0, step=1, limit=4
      $region33: #{input_stem_forward.1} parent=31 // loop_pre_header
        _
      $region34: #{input_stem_forward.1} parent=31 // loop_header
        %s859 = sphi 0, %s863
        %p860 = scmp.ge.s32.totalorder %s859, 4
        %v864 = vphi %v857, %v2076
      $region35: #{input_stem_forward.1} parent=31 // loop_header_branch
        %862 = sbr.rel (%p860) target = $region39
      $region36: #{input_stem_forward.1} parent=31 // loop_body
        %s865 = sadd.s32 %s195, %s859
        %s866 = smul.addr %s865, 4
        %s867 = scalar_lea.vmem %s183, %s866
        %v868 = vld [vmem:[%s867] sm:$0x3]
        %v869 = vld [vmem:[%s867] sm:$0x7]
        %v870 = vld [vmem:[%s867] sm:$0x6]
        %s871 = sadd.s32 %s865, 1
        %s872 = smul.addr %s871, 4
        %s873 = scalar_lea.vmem %s183, %s872
        %v874 = vld [vmem:[%s873] sm:$0x3]
        %v875 = vld [vmem:[%s873] sm:$0x7]
        %v876 = vld [vmem:[%s873] sm:$0x6]
        %s877 = sadd.s32 %s865, 2
        %s878 = smul.addr %s877, 4
        %s879 = scalar_lea.vmem %s183, %s878
        %v880 = vld [vmem:[%s879] sm:$0x3]
        %v881 = vld [vmem:[%s879] sm:$0x7]
        %v882 = vld [vmem:[%s879] sm:$0x6]
        %v884 = vunpack.c.l.b16 %v869
        %v885 = vpack.c.b16 %v884, %v884
        %v887 = vshrl.u32 %v885, 16
        %v889 = vshll.u32 %v885, 16
        %v891 = vrot.slane %v889, 1
        %v892 = vor.u32 %v887, %v891
        %893 = vrot.lane.b32.xlu0 %v892, 64
        %v894 = vpop.permute.xlu0 %893
        %v896 = vunpack.c.l.b16 %v870
        %v897 = vpack.c.b16 %v896, %v896
        %v898 = vrot.slane %v897, 1
        %v900 = vunpack.c.l.b16 %v874
        %v901 = vpack.c.b16 %v900, %v900
        %902 = vrot.lane.b32.xlu0 %v901, 64
        %v903 = vpop.permute.xlu0 %902
        %v905 = vunpack.c.l.b16 %v875
        %v906 = vpack.c.b16 %v905, %v905
        %v908 = vshrl.u32 %v906, 16
        %v910 = vshll.u32 %v906, 16
        %v912 = vrot.slane %v910, 1
        %v913 = vor.u32 %v908, %v912
        %v915 = vunpack.c.l.b16 %v876
        %v916 = vpack.c.b16 %v915, %v915
        %v917 = vrot.slane %v916, 1
        %918 = vrot.lane.b32.xlu0 %v917, 64
        %v919 = vpop.permute.xlu0 %918
        %v921 = vunpack.c.l.b16 %v881
        %v922 = vpack.c.b16 %v921, %v921
        %v924 = vshrl.u32 %v922, 16
        %v926 = vshll.u32 %v922, 16
        %v928 = vrot.slane %v926, 1
        %v929 = vor.u32 %v924, %v928
        %930 = vrot.lane.b32.xlu0 %v929, 64
        %v931 = vpop.permute.xlu0 %930
        %v933 = vunpack.c.l.b16 %v882
        %v934 = vpack.c.b16 %v933, %v933
        %v935 = vrot.slane %v934, 1
        %v938 = vsel %vm276, %v868, %v894
        %v942 = vsel %vm276, %v898, %v903
        %v946 = vsel %vm276, %v913, %v919
        %v950 = vsel %vm276, %v880, %v931
        %v952 = vld [vmem:[%s1] sm:$0xff]
        %v953 = vld [vmem:[%s1 + $0x8] sm:$0xff]
        %v954 = vld [vmem:[%s1 + $0x10] sm:$0xff]
        %v955 = vld [vmem:[%s1 + $0x18] sm:$0xff]
        %v956 = vld [vmem:[%s1 + $0x20] sm:$0xff]
        %v957 = vld [vmem:[%s1 + $0x28] sm:$0xff]
        %v958 = vld [vmem:[%s1 + $0x30] sm:$0xff]
        %v959 = vld [vmem:[%s1 + $0x38] sm:$0xff]
        %v960 = vld [vmem:[%s1 + $0x40] sm:$0xff]
        %v961 = vld [vmem:[%s1 + $0x48] sm:$0xff]
        %v962 = vld [vmem:[%s1 + $0x50] sm:$0xff]
        %v963 = vld [vmem:[%s1 + $0x58] sm:$0xff]
        %v964 = vld [vmem:[%s1 + $0x60] sm:$0xff]
        %v965 = vld [vmem:[%s1 + $0x68] sm:$0xff]
        %v966 = vld [vmem:[%s1 + $0x70] sm:$0xff]
        %v967 = vld [vmem:[%s1 + $0x78] sm:$0xff]
        %v968 = vld [vmem:[%s1 + $0x80] sm:$0xff]
        %v969 = vld [vmem:[%s1 + $0x88] sm:$0xff]
        %v970 = vld [vmem:[%s1 + $0x90] sm:$0xff]
        %v971 = vld [vmem:[%s1 + $0x98] sm:$0xff]
        %v972 = vld [vmem:[%s1 + $0xa0] sm:$0xff]
        %v973 = vld [vmem:[%s1 + $0xa8] sm:$0xff]
        %v974 = vld [vmem:[%s1 + $0xb0] sm:$0xff]
        %v975 = vld [vmem:[%s1 + $0xb8] sm:$0xff]
        %v976 = vld [vmem:[%s1 + $0xc0] sm:$0xff]
        %v977 = vld [vmem:[%s1 + $0xc8] sm:$0xff]
        %v978 = vld [vmem:[%s1 + $0xd0] sm:$0xff]
        %v979 = vld [vmem:[%s1 + $0xd8] sm:$0xff]
        %v980 = vld [vmem:[%s1 + $0xe0] sm:$0xff]
        %v981 = vld [vmem:[%s1 + $0xe8] sm:$0xff]
        %v982 = vld [vmem:[%s1 + $0xf0] sm:$0xff]
        %v983 = vld [vmem:[%s1 + $0xf8] sm:$0xff]
        %v984 = vld [vmem:[%s1 + $0x100] sm:$0xff]
        %v985 = vld [vmem:[%s1 + $0x108] sm:$0xff]
        %v986 = vld [vmem:[%s1 + $0x110] sm:$0xff]
        %v987 = vld [vmem:[%s1 + $0x118] sm:$0xff]
        %v988 = vld [vmem:[%s1 + $0x120] sm:$0xff]
        %v989 = vld [vmem:[%s1 + $0x128] sm:$0xff]
        %v990 = vld [vmem:[%s1 + $0x130] sm:$0xff]
        %v991 = vld [vmem:[%s1 + $0x138] sm:$0xff]
        %v992 = vld [vmem:[%s1 + $0x140] sm:$0xff]
        %v993 = vld [vmem:[%s1 + $0x148] sm:$0xff]
        %v994 = vld [vmem:[%s1 + $0x150] sm:$0xff]
        %v995 = vld [vmem:[%s1 + $0x158] sm:$0xff]
        %v996 = vld [vmem:[%s1 + $0x160] sm:$0xff]
        %v997 = vld [vmem:[%s1 + $0x168] sm:$0xff]
        %v998 = vld [vmem:[%s1 + $0x170] sm:$0xff]
        %v999 = vld [vmem:[%s1 + $0x178] sm:$0xff]
        %v1000 = vld [vmem:[%s1 + $0x180] sm:$0xff]
        %v1001 = vld [vmem:[%s1 + $0x188] sm:$0xff]
        %v1002 = vld [vmem:[%s1 + $0x190] sm:$0xff]
        %v1003 = vld [vmem:[%s1 + $0x198] sm:$0xff]
        %v1004 = vld [vmem:[%s1 + $0x1a0] sm:$0xff]
        %v1005 = vld [vmem:[%s1 + $0x1a8] sm:$0xff]
        %v1006 = vld [vmem:[%s1 + $0x1b0] sm:$0xff]
        %v1007 = vld [vmem:[%s1 + $0x1b8] sm:$0xff]
        %v1008 = vld [vmem:[%s1 + $0x1c0] sm:$0xff]
        %v1009 = vld [vmem:[%s1 + $0x1c8] sm:$0xff]
        %v1010 = vld [vmem:[%s1 + $0x1d0] sm:$0xff]
        %v1011 = vld [vmem:[%s1 + $0x1d8] sm:$0xff]
        %v1012 = vld [vmem:[%s1 + $0x1e0] sm:$0xff]
        %v1013 = vld [vmem:[%s1 + $0x1e8] sm:$0xff]
        %v1014 = vld [vmem:[%s1 + $0x1f0] sm:$0xff]
        %v1015 = vld [vmem:[%s1 + $0x1f8] sm:$0xff]
        %v1016 = vld [vmem:[%s1 + $0x200] sm:$0xff]
        %v1017 = vld [vmem:[%s1 + $0x208] sm:$0xff]
        %v1018 = vld [vmem:[%s1 + $0x210] sm:$0xff]
        %v1019 = vld [vmem:[%s1 + $0x218] sm:$0xff]
        %v1020 = vld [vmem:[%s1 + $0x220] sm:$0xff]
        %v1021 = vld [vmem:[%s1 + $0x228] sm:$0xff]
        %v1022 = vld [vmem:[%s1 + $0x230] sm:$0xff]
        %v1023 = vld [vmem:[%s1 + $0x238] sm:$0xff]
        %v1024 = vld [vmem:[%s1 + $0x240] sm:$0xff]
        %v1025 = vld [vmem:[%s1 + $0x248] sm:$0xff]
        %v1026 = vld [vmem:[%s1 + $0x250] sm:$0xff]
        %v1027 = vld [vmem:[%s1 + $0x258] sm:$0xff]
        %v1028 = vld [vmem:[%s1 + $0x260] sm:$0xff]
        %v1029 = vld [vmem:[%s1 + $0x268] sm:$0xff]
        %v1030 = vld [vmem:[%s1 + $0x270] sm:$0xff]
        %v1031 = vld [vmem:[%s1 + $0x278] sm:$0xff]
        %v1032 = vld [vmem:[%s1 + $0x280] sm:$0xff]
        %v1033 = vld [vmem:[%s1 + $0x288] sm:$0xff]
        %v1034 = vld [vmem:[%s1 + $0x290] sm:$0xff]
        %v1035 = vld [vmem:[%s1 + $0x298] sm:$0xff]
        %v1036 = vld [vmem:[%s1 + $0x2a0] sm:$0xff]
        %v1037 = vld [vmem:[%s1 + $0x2a8] sm:$0xff]
        %v1038 = vld [vmem:[%s1 + $0x2b0] sm:$0xff]
        %v1039 = vld [vmem:[%s1 + $0x2b8] sm:$0xff]
        %v1040 = vld [vmem:[%s1 + $0x2c0] sm:$0xff]
        %v1041 = vld [vmem:[%s1 + $0x2c8] sm:$0xff]
        %v1042 = vld [vmem:[%s1 + $0x2d0] sm:$0xff]
        %v1043 = vld [vmem:[%s1 + $0x2d8] sm:$0xff]
        %v1044 = vld [vmem:[%s1 + $0x2e0] sm:$0xff]
        %v1045 = vld [vmem:[%s1 + $0x2e8] sm:$0xff]
        %v1046 = vld [vmem:[%s1 + $0x2f0] sm:$0xff]
        %v1047 = vld [vmem:[%s1 + $0x2f8] sm:$0xff]
        %v1048 = vld [vmem:[%s1 + $0x300] sm:$0xff]
        %v1049 = vld [vmem:[%s1 + $0x308] sm:$0xff]
        %v1050 = vld [vmem:[%s1 + $0x310] sm:$0xff]
        %v1051 = vld [vmem:[%s1 + $0x318] sm:$0xff]
        %v1052 = vld [vmem:[%s1 + $0x320] sm:$0xff]
        %v1053 = vld [vmem:[%s1 + $0x328] sm:$0xff]
        %v1054 = vld [vmem:[%s1 + $0x330] sm:$0xff]
        %v1055 = vld [vmem:[%s1 + $0x338] sm:$0xff]
        %v1056 = vld [vmem:[%s1 + $0x340] sm:$0xff]
        %v1057 = vld [vmem:[%s1 + $0x348] sm:$0xff]
        %v1058 = vld [vmem:[%s1 + $0x350] sm:$0xff]
        %v1059 = vld [vmem:[%s1 + $0x358] sm:$0xff]
        %v1060 = vld [vmem:[%s1 + $0x360] sm:$0xff]
        %v1061 = vld [vmem:[%s1 + $0x368] sm:$0xff]
        %v1062 = vld [vmem:[%s1 + $0x370] sm:$0xff]
        %v1063 = vld [vmem:[%s1 + $0x378] sm:$0xff]
        %v1064 = vld [vmem:[%s1 + $0x380] sm:$0xff]
        %v1065 = vld [vmem:[%s1 + $0x388] sm:$0xff]
        %v1066 = vld [vmem:[%s1 + $0x390] sm:$0xff]
        %v1067 = vld [vmem:[%s1 + $0x398] sm:$0xff]
        %v1068 = vld [vmem:[%s1 + $0x3a0] sm:$0xff]
        %v1069 = vld [vmem:[%s1 + $0x3a8] sm:$0xff]
        %v1070 = vld [vmem:[%s1 + $0x3b0] sm:$0xff]
        %v1071 = vld [vmem:[%s1 + $0x3b8] sm:$0xff]
        %v1072 = vld [vmem:[%s1 + $0x3c0] sm:$0xff]
        %v1073 = vld [vmem:[%s1 + $0x3c8] sm:$0xff]
        %v1074 = vld [vmem:[%s1 + $0x3d0] sm:$0xff]
        %v1075 = vld [vmem:[%s1 + $0x3d8] sm:$0xff]
        %v1076 = vld [vmem:[%s1 + $0x3e0] sm:$0xff]
        %v1077 = vld [vmem:[%s1 + $0x3e8] sm:$0xff]
        %v1078 = vld [vmem:[%s1 + $0x3f0] sm:$0xff]
        %v1079 = vld [vmem:[%s1 + $0x3f8] sm:$0xff]
        %v1080 = vld [vmem:[%s1 + $0x400] sm:$0xff]
        %v1081 = vld [vmem:[%s1 + $0x408] sm:$0xff]
        %v1082 = vld [vmem:[%s1 + $0x410] sm:$0xff]
        %v1083 = vld [vmem:[%s1 + $0x418] sm:$0xff]
        %v1084 = vld [vmem:[%s1 + $0x420] sm:$0xff]
        %v1085 = vld [vmem:[%s1 + $0x428] sm:$0xff]
        %v1086 = vld [vmem:[%s1 + $0x430] sm:$0xff]
        %v1087 = vld [vmem:[%s1 + $0x438] sm:$0xff]
        %v1088 = vld [vmem:[%s1 + $0x440] sm:$0xff]
        %v1089 = vld [vmem:[%s1 + $0x448] sm:$0xff]
        %v1090 = vld [vmem:[%s1 + $0x450] sm:$0xff]
        %v1091 = vld [vmem:[%s1 + $0x458] sm:$0xff]
        %v1092 = vld [vmem:[%s1 + $0x460] sm:$0xff]
        %v1093 = vld [vmem:[%s1 + $0x468] sm:$0xff]
        %v1094 = vld [vmem:[%s1 + $0x470] sm:$0xff]
        %v1095 = vld [vmem:[%s1 + $0x478] sm:$0xff]
        %v1240 = vunpack.c.l.b16 %v952
        %v1241 = vunpack.c.h.b16 %v952
        %v1242 = vunpack.c.l.b16 %v953
        %v1243 = vunpack.c.h.b16 %v953
        %v1244 = vunpack.c.l.b16 %v954
        %v1245 = vunpack.c.h.b16 %v954
        %v1246 = vunpack.c.l.b16 %v955
        %v1247 = vunpack.c.h.b16 %v955
        %v1248 = vunpack.c.l.b16 %v956
        %v1249 = vunpack.c.h.b16 %v956
        %v1250 = vunpack.c.l.b16 %v957
        %v1251 = vunpack.c.h.b16 %v957
        %v1252 = vunpack.c.l.b16 %v958
        %v1253 = vunpack.c.h.b16 %v958
        %v1254 = vunpack.c.l.b16 %v959
        %v1255 = vunpack.c.h.b16 %v959
        %v1256 = vunpack.c.l.b16 %v960
        %v1257 = vunpack.c.h.b16 %v960
        %v1258 = vunpack.c.l.b16 %v961
        %v1259 = vunpack.c.h.b16 %v961
        %v1260 = vunpack.c.l.b16 %v962
        %v1261 = vunpack.c.h.b16 %v962
        %v1262 = vunpack.c.l.b16 %v963
        %v1263 = vunpack.c.h.b16 %v963
        %v1264 = vunpack.c.l.b16 %v964
        %v1265 = vunpack.c.h.b16 %v964
        %v1266 = vunpack.c.l.b16 %v965
        %v1267 = vunpack.c.h.b16 %v965
        %v1268 = vunpack.c.l.b16 %v966
        %v1269 = vunpack.c.h.b16 %v966
        %v1270 = vunpack.c.l.b16 %v967
        %v1271 = vunpack.c.h.b16 %v967
        %v1272 = vunpack.c.l.b16 %v968
        %v1273 = vunpack.c.h.b16 %v968
        %v1274 = vunpack.c.l.b16 %v969
        %v1275 = vunpack.c.h.b16 %v969
        %v1276 = vunpack.c.l.b16 %v970
        %v1277 = vunpack.c.h.b16 %v970
        %v1278 = vunpack.c.l.b16 %v971
        %v1279 = vunpack.c.h.b16 %v971
        %v1280 = vunpack.c.l.b16 %v972
        %v1281 = vunpack.c.h.b16 %v972
        %v1282 = vunpack.c.l.b16 %v973
        %v1283 = vunpack.c.h.b16 %v973
        %v1284 = vunpack.c.l.b16 %v974
        %v1285 = vunpack.c.h.b16 %v974
        %v1286 = vunpack.c.l.b16 %v975
        %v1287 = vunpack.c.h.b16 %v975
        %v1288 = vunpack.c.l.b16 %v976
        %v1289 = vunpack.c.h.b16 %v976
        %v1290 = vunpack.c.l.b16 %v977
        %v1291 = vunpack.c.h.b16 %v977
        %v1292 = vunpack.c.l.b16 %v978
        %v1293 = vunpack.c.h.b16 %v978
        %v1294 = vunpack.c.l.b16 %v979
        %v1295 = vunpack.c.h.b16 %v979
        %v1296 = vunpack.c.l.b16 %v980
        %v1297 = vunpack.c.h.b16 %v980
        %v1298 = vunpack.c.l.b16 %v981
        %v1299 = vunpack.c.h.b16 %v981
        %v1300 = vunpack.c.l.b16 %v982
        %v1301 = vunpack.c.h.b16 %v982
        %v1302 = vunpack.c.l.b16 %v983
        %v1303 = vunpack.c.h.b16 %v983
        %v1304 = vunpack.c.l.b16 %v984
        %v1305 = vunpack.c.h.b16 %v984
        %v1306 = vunpack.c.l.b16 %v985
        %v1307 = vunpack.c.h.b16 %v985
        %v1308 = vunpack.c.l.b16 %v986
        %v1309 = vunpack.c.h.b16 %v986
        %v1310 = vunpack.c.l.b16 %v987
        %v1311 = vunpack.c.h.b16 %v987
        %v1312 = vunpack.c.l.b16 %v988
        %v1313 = vunpack.c.h.b16 %v988
        %v1314 = vunpack.c.l.b16 %v989
        %v1315 = vunpack.c.h.b16 %v989
        %v1316 = vunpack.c.l.b16 %v990
        %v1317 = vunpack.c.h.b16 %v990
        %v1318 = vunpack.c.l.b16 %v991
        %v1319 = vunpack.c.h.b16 %v991
        %v1320 = vunpack.c.l.b16 %v992
        %v1321 = vunpack.c.h.b16 %v992
        %v1322 = vunpack.c.l.b16 %v993
        %v1323 = vunpack.c.h.b16 %v993
        %v1324 = vunpack.c.l.b16 %v994
        %v1325 = vunpack.c.h.b16 %v994
        %v1326 = vunpack.c.l.b16 %v995
        %v1327 = vunpack.c.h.b16 %v995
        %v1328 = vunpack.c.l.b16 %v996
        %v1329 = vunpack.c.h.b16 %v996
        %v1330 = vunpack.c.l.b16 %v997
        %v1331 = vunpack.c.h.b16 %v997
        %v1332 = vunpack.c.l.b16 %v998
        %v1333 = vunpack.c.h.b16 %v998
        %v1334 = vunpack.c.l.b16 %v999
        %v1335 = vunpack.c.h.b16 %v999
        %v1336 = vunpack.c.l.b16 %v1000
        %v1337 = vunpack.c.h.b16 %v1000
        %v1338 = vunpack.c.l.b16 %v1001
        %v1339 = vunpack.c.h.b16 %v1001
        %v1340 = vunpack.c.l.b16 %v1002
        %v1341 = vunpack.c.h.b16 %v1002
        %v1342 = vunpack.c.l.b16 %v1003
        %v1343 = vunpack.c.h.b16 %v1003
        %v1344 = vunpack.c.l.b16 %v1004
        %v1345 = vunpack.c.h.b16 %v1004
        %v1346 = vunpack.c.l.b16 %v1005
        %v1347 = vunpack.c.h.b16 %v1005
        %v1348 = vunpack.c.l.b16 %v1006
        %v1349 = vunpack.c.h.b16 %v1006
        %v1350 = vunpack.c.l.b16 %v1007
        %v1351 = vunpack.c.h.b16 %v1007
        %v1352 = vunpack.c.l.b16 %v1008
        %v1353 = vunpack.c.h.b16 %v1008
        %v1354 = vunpack.c.l.b16 %v1009
        %v1355 = vunpack.c.h.b16 %v1009
        %v1356 = vunpack.c.l.b16 %v1010
        %v1357 = vunpack.c.h.b16 %v1010
        %v1358 = vunpack.c.l.b16 %v1011
        %v1359 = vunpack.c.h.b16 %v1011
        %v1360 = vunpack.c.l.b16 %v1012
        %v1361 = vunpack.c.h.b16 %v1012
        %v1362 = vunpack.c.l.b16 %v1013
        %v1363 = vunpack.c.h.b16 %v1013
        %v1364 = vunpack.c.l.b16 %v1014
        %v1365 = vunpack.c.h.b16 %v1014
        %v1366 = vunpack.c.l.b16 %v1015
        %v1367 = vunpack.c.h.b16 %v1015
        %v1368 = vunpack.c.l.b16 %v1016
        %v1369 = vunpack.c.h.b16 %v1016
        %v1370 = vunpack.c.l.b16 %v1017
        %v1371 = vunpack.c.h.b16 %v1017
        %v1372 = vunpack.c.l.b16 %v1018
        %v1373 = vunpack.c.h.b16 %v1018
        %v1374 = vunpack.c.l.b16 %v1019
        %v1375 = vunpack.c.h.b16 %v1019
        %v1376 = vunpack.c.l.b16 %v1020
        %v1377 = vunpack.c.h.b16 %v1020
        %v1378 = vunpack.c.l.b16 %v1021
        %v1379 = vunpack.c.h.b16 %v1021
        %v1380 = vunpack.c.l.b16 %v1022
        %v1381 = vunpack.c.h.b16 %v1022
        %v1382 = vunpack.c.l.b16 %v1023
        %v1383 = vunpack.c.h.b16 %v1023
        %v1384 = vunpack.c.l.b16 %v1024
        %v1385 = vunpack.c.h.b16 %v1024
        %v1386 = vunpack.c.l.b16 %v1025
        %v1387 = vunpack.c.h.b16 %v1025
        %v1388 = vunpack.c.l.b16 %v1026
        %v1389 = vunpack.c.h.b16 %v1026
        %v1390 = vunpack.c.l.b16 %v1027
        %v1391 = vunpack.c.h.b16 %v1027
        %v1392 = vunpack.c.l.b16 %v1028
        %v1393 = vunpack.c.h.b16 %v1028
        %v1394 = vunpack.c.l.b16 %v1029
        %v1395 = vunpack.c.h.b16 %v1029
        %v1396 = vunpack.c.l.b16 %v1030
        %v1397 = vunpack.c.h.b16 %v1030
        %v1398 = vunpack.c.l.b16 %v1031
        %v1399 = vunpack.c.h.b16 %v1031
        %v1400 = vunpack.c.l.b16 %v1032
        %v1401 = vunpack.c.h.b16 %v1032
        %v1402 = vunpack.c.l.b16 %v1033
        %v1403 = vunpack.c.h.b16 %v1033
        %v1404 = vunpack.c.l.b16 %v1034
        %v1405 = vunpack.c.h.b16 %v1034
        %v1406 = vunpack.c.l.b16 %v1035
        %v1407 = vunpack.c.h.b16 %v1035
        %v1408 = vunpack.c.l.b16 %v1036
        %v1409 = vunpack.c.h.b16 %v1036
        %v1410 = vunpack.c.l.b16 %v1037
        %v1411 = vunpack.c.h.b16 %v1037
        %v1412 = vunpack.c.l.b16 %v1038
        %v1413 = vunpack.c.h.b16 %v1038
        %v1414 = vunpack.c.l.b16 %v1039
        %v1415 = vunpack.c.h.b16 %v1039
        %v1416 = vunpack.c.l.b16 %v1040
        %v1417 = vunpack.c.h.b16 %v1040
        %v1418 = vunpack.c.l.b16 %v1041
        %v1419 = vunpack.c.h.b16 %v1041
        %v1420 = vunpack.c.l.b16 %v1042
        %v1421 = vunpack.c.h.b16 %v1042
        %v1422 = vunpack.c.l.b16 %v1043
        %v1423 = vunpack.c.h.b16 %v1043
        %v1424 = vunpack.c.l.b16 %v1044
        %v1425 = vunpack.c.h.b16 %v1044
        %v1426 = vunpack.c.l.b16 %v1045
        %v1427 = vunpack.c.h.b16 %v1045
        %v1428 = vunpack.c.l.b16 %v1046
        %v1429 = vunpack.c.h.b16 %v1046
        %v1430 = vunpack.c.l.b16 %v1047
        %v1431 = vunpack.c.h.b16 %v1047
        %v1432 = vunpack.c.l.b16 %v1048
        %v1433 = vunpack.c.h.b16 %v1048
        %v1434 = vunpack.c.l.b16 %v1049
        %v1435 = vunpack.c.h.b16 %v1049
        %v1436 = vunpack.c.l.b16 %v1050
        %v1437 = vunpack.c.h.b16 %v1050
        %v1438 = vunpack.c.l.b16 %v1051
        %v1439 = vunpack.c.h.b16 %v1051
        %v1440 = vunpack.c.l.b16 %v1052
        %v1441 = vunpack.c.h.b16 %v1052
        %v1442 = vunpack.c.l.b16 %v1053
        %v1443 = vunpack.c.h.b16 %v1053
        %v1444 = vunpack.c.l.b16 %v1054
        %v1445 = vunpack.c.h.b16 %v1054
        %v1446 = vunpack.c.l.b16 %v1055
        %v1447 = vunpack.c.h.b16 %v1055
        %v1448 = vunpack.c.l.b16 %v1056
        %v1449 = vunpack.c.h.b16 %v1056
        %v1450 = vunpack.c.l.b16 %v1057
        %v1451 = vunpack.c.h.b16 %v1057
        %v1452 = vunpack.c.l.b16 %v1058
        %v1453 = vunpack.c.h.b16 %v1058
        %v1454 = vunpack.c.l.b16 %v1059
        %v1455 = vunpack.c.h.b16 %v1059
        %v1456 = vunpack.c.l.b16 %v1060
        %v1457 = vunpack.c.h.b16 %v1060
        %v1458 = vunpack.c.l.b16 %v1061
        %v1459 = vunpack.c.h.b16 %v1061
        %v1460 = vunpack.c.l.b16 %v1062
        %v1461 = vunpack.c.h.b16 %v1062
        %v1462 = vunpack.c.l.b16 %v1063
        %v1463 = vunpack.c.h.b16 %v1063
        %v1464 = vunpack.c.l.b16 %v1064
        %v1465 = vunpack.c.h.b16 %v1064
        %v1466 = vunpack.c.l.b16 %v1065
        %v1467 = vunpack.c.h.b16 %v1065
        %v1468 = vunpack.c.l.b16 %v1066
        %v1469 = vunpack.c.h.b16 %v1066
        %v1470 = vunpack.c.l.b16 %v1067
        %v1471 = vunpack.c.h.b16 %v1067
        %v1472 = vunpack.c.l.b16 %v1068
        %v1473 = vunpack.c.h.b16 %v1068
        %v1474 = vunpack.c.l.b16 %v1069
        %v1475 = vunpack.c.h.b16 %v1069
        %v1476 = vunpack.c.l.b16 %v1070
        %v1477 = vunpack.c.h.b16 %v1070
        %v1478 = vunpack.c.l.b16 %v1071
        %v1479 = vunpack.c.h.b16 %v1071
        %v1480 = vunpack.c.l.b16 %v1072
        %v1481 = vunpack.c.h.b16 %v1072
        %v1482 = vunpack.c.l.b16 %v1073
        %v1483 = vunpack.c.h.b16 %v1073
        %v1484 = vunpack.c.l.b16 %v1074
        %v1485 = vunpack.c.h.b16 %v1074
        %v1486 = vunpack.c.l.b16 %v1075
        %v1487 = vunpack.c.h.b16 %v1075
        %v1488 = vunpack.c.l.b16 %v1076
        %v1489 = vunpack.c.h.b16 %v1076
        %v1490 = vunpack.c.l.b16 %v1077
        %v1491 = vunpack.c.h.b16 %v1077
        %v1492 = vunpack.c.l.b16 %v1078
        %v1493 = vunpack.c.h.b16 %v1078
        %v1494 = vunpack.c.l.b16 %v1079
        %v1495 = vunpack.c.h.b16 %v1079
        %v1496 = vunpack.c.l.b16 %v1080
        %v1497 = vunpack.c.h.b16 %v1080
        %v1498 = vunpack.c.l.b16 %v1081
        %v1499 = vunpack.c.h.b16 %v1081
        %v1500 = vunpack.c.l.b16 %v1082
        %v1501 = vunpack.c.h.b16 %v1082
        %v1502 = vunpack.c.l.b16 %v1083
        %v1503 = vunpack.c.h.b16 %v1083
        %v1504 = vunpack.c.l.b16 %v1084
        %v1505 = vunpack.c.h.b16 %v1084
        %v1506 = vunpack.c.l.b16 %v1085
        %v1507 = vunpack.c.h.b16 %v1085
        %v1508 = vunpack.c.l.b16 %v1086
        %v1509 = vunpack.c.h.b16 %v1086
        %v1510 = vunpack.c.l.b16 %v1087
        %v1511 = vunpack.c.h.b16 %v1087
        %v1512 = vunpack.c.l.b16 %v1088
        %v1513 = vunpack.c.h.b16 %v1088
        %v1514 = vunpack.c.l.b16 %v1089
        %v1515 = vunpack.c.h.b16 %v1089
        %v1516 = vunpack.c.l.b16 %v1090
        %v1517 = vunpack.c.h.b16 %v1090
        %v1518 = vunpack.c.l.b16 %v1091
        %v1519 = vunpack.c.h.b16 %v1091
        %v1520 = vunpack.c.l.b16 %v1092
        %v1521 = vunpack.c.h.b16 %v1092
        %v1522 = vunpack.c.l.b16 %v1093
        %v1523 = vunpack.c.h.b16 %v1093
        %v1524 = vunpack.c.l.b16 %v1094
        %v1525 = vunpack.c.h.b16 %v1094
        %v1526 = vunpack.c.l.b16 %v1095
        %v1527 = vunpack.c.h.b16 %v1095
        %v1528 = vpack.c.b16 %v1244, %v1240
        %v1529 = vpack.c.b16 %v1245, %v1241
        %v1530 = vpack.c.b16 %v1246, %v1242
        %v1531 = vpack.c.b16 %v1247, %v1243
        %v1532 = vpack.c.b16 %v1252, %v1248
        %v1533 = vpack.c.b16 %v1253, %v1249
        %v1534 = vpack.c.b16 %v1254, %v1250
        %v1535 = vpack.c.b16 %v1255, %v1251
        %v1536 = vpack.c.b16 %v1260, %v1256
        %v1537 = vpack.c.b16 %v1261, %v1257
        %v1538 = vpack.c.b16 %v1262, %v1258
        %v1539 = vpack.c.b16 %v1263, %v1259
        %v1540 = vpack.c.b16 %v1268, %v1264
        %v1541 = vpack.c.b16 %v1269, %v1265
        %v1542 = vpack.c.b16 %v1270, %v1266
        %v1543 = vpack.c.b16 %v1271, %v1267
        %v1544 = vpack.c.b16 %v1276, %v1272
        %v1545 = vpack.c.b16 %v1277, %v1273
        %v1546 = vpack.c.b16 %v1278, %v1274
        %v1547 = vpack.c.b16 %v1279, %v1275
        %v1548 = vpack.c.b16 %v1284, %v1280
        %v1549 = vpack.c.b16 %v1285, %v1281
        %v1550 = vpack.c.b16 %v1286, %v1282
        %v1551 = vpack.c.b16 %v1287, %v1283
        %v1552 = vpack.c.b16 %v1292, %v1288
        %v1553 = vpack.c.b16 %v1293, %v1289
        %v1554 = vpack.c.b16 %v1294, %v1290
        %v1555 = vpack.c.b16 %v1295, %v1291
        %v1556 = vpack.c.b16 %v1300, %v1296
        %v1557 = vpack.c.b16 %v1301, %v1297
        %v1558 = vpack.c.b16 %v1302, %v1298
        %v1559 = vpack.c.b16 %v1303, %v1299
        %v1560 = vpack.c.b16 %v1308, %v1304
        %v1561 = vpack.c.b16 %v1309, %v1305
        %v1562 = vpack.c.b16 %v1310, %v1306
        %v1563 = vpack.c.b16 %v1311, %v1307
        %v1564 = vpack.c.b16 %v1316, %v1312
        %v1565 = vpack.c.b16 %v1317, %v1313
        %v1566 = vpack.c.b16 %v1318, %v1314
        %v1567 = vpack.c.b16 %v1319, %v1315
        %v1568 = vpack.c.b16 %v1324, %v1320
        %v1569 = vpack.c.b16 %v1325, %v1321
        %v1570 = vpack.c.b16 %v1326, %v1322
        %v1571 = vpack.c.b16 %v1327, %v1323
        %v1572 = vpack.c.b16 %v1332, %v1328
        %v1573 = vpack.c.b16 %v1333, %v1329
        %v1574 = vpack.c.b16 %v1334, %v1330
        %v1575 = vpack.c.b16 %v1335, %v1331
        %v1576 = vpack.c.b16 %v1340, %v1336
        %v1577 = vpack.c.b16 %v1341, %v1337
        %v1578 = vpack.c.b16 %v1342, %v1338
        %v1579 = vpack.c.b16 %v1343, %v1339
        %v1580 = vpack.c.b16 %v1348, %v1344
        %v1581 = vpack.c.b16 %v1349, %v1345
        %v1582 = vpack.c.b16 %v1350, %v1346
        %v1583 = vpack.c.b16 %v1351, %v1347
        %v1584 = vpack.c.b16 %v1356, %v1352
        %v1585 = vpack.c.b16 %v1357, %v1353
        %v1586 = vpack.c.b16 %v1358, %v1354
        %v1587 = vpack.c.b16 %v1359, %v1355
        %v1588 = vpack.c.b16 %v1364, %v1360
        %v1589 = vpack.c.b16 %v1365, %v1361
        %v1590 = vpack.c.b16 %v1366, %v1362
        %v1591 = vpack.c.b16 %v1367, %v1363
        %v1592 = vpack.c.b16 %v1372, %v1368
        %v1593 = vpack.c.b16 %v1373, %v1369
        %v1594 = vpack.c.b16 %v1374, %v1370
        %v1595 = vpack.c.b16 %v1375, %v1371
        %v1596 = vpack.c.b16 %v1380, %v1376
        %v1597 = vpack.c.b16 %v1381, %v1377
        %v1598 = vpack.c.b16 %v1382, %v1378
        %v1599 = vpack.c.b16 %v1383, %v1379
        %v1600 = vpack.c.b16 %v1388, %v1384
        %v1601 = vpack.c.b16 %v1389, %v1385
        %v1602 = vpack.c.b16 %v1390, %v1386
        %v1603 = vpack.c.b16 %v1391, %v1387
        %v1604 = vpack.c.b16 %v1396, %v1392
        %v1605 = vpack.c.b16 %v1397, %v1393
        %v1606 = vpack.c.b16 %v1398, %v1394
        %v1607 = vpack.c.b16 %v1399, %v1395
        %v1608 = vpack.c.b16 %v1404, %v1400
        %v1609 = vpack.c.b16 %v1405, %v1401
        %v1610 = vpack.c.b16 %v1406, %v1402
        %v1611 = vpack.c.b16 %v1407, %v1403
        %v1612 = vpack.c.b16 %v1412, %v1408
        %v1613 = vpack.c.b16 %v1413, %v1409
        %v1614 = vpack.c.b16 %v1414, %v1410
        %v1615 = vpack.c.b16 %v1415, %v1411
        %v1616 = vpack.c.b16 %v1420, %v1416
        %v1617 = vpack.c.b16 %v1421, %v1417
        %v1618 = vpack.c.b16 %v1422, %v1418
        %v1619 = vpack.c.b16 %v1423, %v1419
        %v1620 = vpack.c.b16 %v1428, %v1424
        %v1621 = vpack.c.b16 %v1429, %v1425
        %v1622 = vpack.c.b16 %v1430, %v1426
        %v1623 = vpack.c.b16 %v1431, %v1427
        %v1624 = vpack.c.b16 %v1436, %v1432
        %v1625 = vpack.c.b16 %v1437, %v1433
        %v1626 = vpack.c.b16 %v1438, %v1434
        %v1627 = vpack.c.b16 %v1439, %v1435
        %v1628 = vpack.c.b16 %v1444, %v1440
        %v1629 = vpack.c.b16 %v1445, %v1441
        %v1630 = vpack.c.b16 %v1446, %v1442
        %v1631 = vpack.c.b16 %v1447, %v1443
        %v1632 = vpack.c.b16 %v1452, %v1448
        %v1633 = vpack.c.b16 %v1453, %v1449
        %v1634 = vpack.c.b16 %v1454, %v1450
        %v1635 = vpack.c.b16 %v1455, %v1451
        %v1636 = vpack.c.b16 %v1460, %v1456
        %v1637 = vpack.c.b16 %v1461, %v1457
        %v1638 = vpack.c.b16 %v1462, %v1458
        %v1639 = vpack.c.b16 %v1463, %v1459
        %v1640 = vpack.c.b16 %v1468, %v1464
        %v1641 = vpack.c.b16 %v1469, %v1465
        %v1642 = vpack.c.b16 %v1470, %v1466
        %v1643 = vpack.c.b16 %v1471, %v1467
        %v1644 = vpack.c.b16 %v1476, %v1472
        %v1645 = vpack.c.b16 %v1477, %v1473
        %v1646 = vpack.c.b16 %v1478, %v1474
        %v1647 = vpack.c.b16 %v1479, %v1475
        %v1648 = vpack.c.b16 %v1484, %v1480
        %v1649 = vpack.c.b16 %v1485, %v1481
        %v1650 = vpack.c.b16 %v1486, %v1482
        %v1651 = vpack.c.b16 %v1487, %v1483
        %v1652 = vpack.c.b16 %v1492, %v1488
        %v1653 = vpack.c.b16 %v1493, %v1489
        %v1654 = vpack.c.b16 %v1494, %v1490
        %v1655 = vpack.c.b16 %v1495, %v1491
        %v1656 = vpack.c.b16 %v1500, %v1496
        %v1657 = vpack.c.b16 %v1501, %v1497
        %v1658 = vpack.c.b16 %v1502, %v1498
        %v1659 = vpack.c.b16 %v1503, %v1499
        %v1660 = vpack.c.b16 %v1508, %v1504
        %v1661 = vpack.c.b16 %v1509, %v1505
        %v1662 = vpack.c.b16 %v1510, %v1506
        %v1663 = vpack.c.b16 %v1511, %v1507
        %v1664 = vpack.c.b16 %v1516, %v1512
        %v1665 = vpack.c.b16 %v1517, %v1513
        %v1666 = vpack.c.b16 %v1518, %v1514
        %v1667 = vpack.c.b16 %v1519, %v1515
        %v1668 = vpack.c.b16 %v1524, %v1520
        %v1669 = vpack.c.b16 %v1525, %v1521
        %v1670 = vpack.c.b16 %v1526, %v1522
        %v1671 = vpack.c.b16 %v1527, %v1523
        %v1817 = vsel %vm276, %v935, 0
        %1819 = vmatprep.subr.bf16.mxu0 %v1529
        %1820 = vmatpush1.bf16.msra.mxu0 %v1528
        %1821 = vmatprep.subr.bf16.mxu0 %v1533
        %1822 = vmatpush1.bf16.msra.mxu0 %v1532
        %1823 = vmatprep.subr.bf16.mxu0 %v1537
        %1824 = vmatpush1.bf16.msra.mxu0 %v1536
        %1825 = vmatprep.subr.bf16.mxu0 %v1541
        %1826 = vmatpush1.bf16.msra.mxu0 %v1540
        %1827 = vmatprep.subr.bf16.mxu0 %v1545
        %1828 = vmatpush1.bf16.msra.mxu0 %v1544
        %1829 = vmatprep.subr.bf16.mxu0 %v1549
        %1830 = vmatpush1.bf16.msra.mxu0 %v1548
        %1831 = vmatprep.subr.bf16.mxu0 %v1553
        %1832 = vmatpush1.bf16.msra.mxu0 %v1552
        %1833 = vmatprep.subr.bf16.mxu0 %v1557
        %1834 = vmatpush1.bf16.msra.mxu0 %v1556
        %1835 = vmatprep.subr.bf16.mxu0 %v1561
        %1836 = vmatpush1.bf16.msra.mxu0 %v1560
        %1837 = vmatprep.subr.bf16.mxu0 %v1565
        %1838 = vmatpush1.bf16.msra.mxu0 %v1564
        %1839 = vmatprep.subr.bf16.mxu0 %v1569
        %1840 = vmatpush1.bf16.msra.mxu0 %v1568
        %1841 = vmatprep.subr.bf16.mxu0 %v1573
        %1842 = vmatpush1.bf16.msra.mxu0 %v1572
        %1843 = vmatprep.subr.bf16.mxu0 %v1577
        %1844 = vmatpush1.bf16.msra.mxu0 %v1576
        %1845 = vmatprep.subr.bf16.mxu0 %v1581
        %1846 = vmatpush1.bf16.msra.mxu0 %v1580
        %1847 = vmatprep.subr.bf16.mxu0 %v1585
        %1848 = vmatpush1.bf16.msra.mxu0 %v1584
        %1849 = vmatprep.subr.bf16.mxu0 %v1589
        %1850 = vmatpush1.bf16.msra.mxu0 %v1588
        %1851 = vmatprep.mubr.bf16.mxu0 %v942
        %1852 = vmatmul.mubr.bf16.gmra.mrb[0].mxu0 %v938
        %v1853 = vpop.f32.mrb[0].mxu0
        %v1854 = vadd.f32 0.0, %v1853
        %v1855 = vpop.f32.mrb[0].mxu0
        %v1856 = vadd.f32 0.0, %v1855
        %v1857 = vpop.f32.mrb[0].mxu0
        %v1858 = vpop.f32.mrb[0].mxu0
        %1859 = vdwg.mxu0
        %1860 = vmatprep.subr.bf16.mxu0 %v1593
        %1861 = vmatpush1.bf16.msra.mxu0 %v1592
        %1862 = vmatprep.subr.bf16.mxu0 %v1597
        %1863 = vmatpush1.bf16.msra.mxu0 %v1596
        %1864 = vmatprep.subr.bf16.mxu0 %v1601
        %1865 = vmatpush1.bf16.msra.mxu0 %v1600
        %1866 = vmatprep.subr.bf16.mxu0 %v1605
        %1867 = vmatpush1.bf16.msra.mxu0 %v1604
        %1868 = vmatprep.subr.bf16.mxu0 %v1609
        %1869 = vmatpush1.bf16.msra.mxu0 %v1608
        %1870 = vmatprep.subr.bf16.mxu0 %v1613
        %1871 = vmatpush1.bf16.msra.mxu0 %v1612
        %1872 = vmatprep.subr.bf16.mxu0 %v1617
        %1873 = vmatpush1.bf16.msra.mxu0 %v1616
        %1874 = vmatprep.subr.bf16.mxu0 %v1621
        %1875 = vmatpush1.bf16.msra.mxu0 %v1620
        %1876 = vmatprep.subr.bf16.mxu0 %v1625
        %1877 = vmatpush1.bf16.msra.mxu0 %v1624
        %1878 = vmatprep.subr.bf16.mxu0 %v1629
        %1879 = vmatpush1.bf16.msra.mxu0 %v1628
        %1880 = vmatprep.subr.bf16.mxu0 %v1633
        %1881 = vmatpush1.bf16.msra.mxu0 %v1632
        %1882 = vmatprep.subr.bf16.mxu0 %v1637
        %1883 = vmatpush1.bf16.msra.mxu0 %v1636
        %1884 = vmatprep.subr.bf16.mxu0 %v1641
        %1885 = vmatpush1.bf16.msra.mxu0 %v1640
        %1886 = vmatprep.subr.bf16.mxu0 %v1645
        %1887 = vmatpush1.bf16.msra.mxu0 %v1644
        %1888 = vmatprep.subr.bf16.mxu0 %v1649
        %1889 = vmatpush1.bf16.msra.mxu0 %v1648
        %1890 = vmatprep.subr.bf16.mxu0 %v1653
        %1891 = vmatpush1.bf16.msra.mxu0 %v1652
        %1892 = vmatprep.mubr.bf16.mxu0 %v950
        %1893 = vmatmul.mubr.bf16.gmra.mrb[0].mxu0 %v946
        %v1894 = vpop.f32.mrb[0].mxu0
        %v1895 = vadd.f32 %v1854, %v1894
        %v1896 = vpop.f32.mrb[0].mxu0
        %v1897 = vadd.f32 %v1856, %v1896
        %v1898 = vpop.f32.mrb[0].mxu0
        %v1899 = vpop.f32.mrb[0].mxu0
        %1900 = vdwg.mxu0
        %1901 = vmatprep.subr.bf16.mxu0 %v1657
        %1902 = vmatpush1.bf16.msra.mxu0 %v1656
        %1903 = vmatprep.subr.bf16.mxu0 %v1661
        %1904 = vmatpush1.bf16.msra.mxu0 %v1660
        %1905 = vmatprep.subr.bf16.mxu0 %v1665
        %1906 = vmatpush1.bf16.msra.mxu0 %v1664
        %1907 = vmatprep.subr.bf16.mxu0 %v1669
        %1908 = vmatpush1.bf16.msra.mxu0 %v1668
        %1909 = vmatprep.subr.bf16.mxu0 0
        %1910 = vmatpush1.bf16.msra.mxu0 0
        %1911 = vmatprep.subr.bf16.mxu0 0
        %1912 = vmatpush1.bf16.msra.mxu0 0
        %1913 = vmatprep.subr.bf16.mxu0 0
        %1914 = vmatpush1.bf16.msra.mxu0 0
        %1915 = vmatprep.subr.bf16.mxu0 0
        %1916 = vmatpush1.bf16.msra.mxu0 0
        %1917 = vmatprep.subr.bf16.mxu0 0
        %1918 = vmatpush1.bf16.msra.mxu0 0
        %1919 = vmatprep.subr.bf16.mxu0 0
        %1920 = vmatpush1.bf16.msra.mxu0 0
        %1921 = vmatprep.subr.bf16.mxu0 0
        %1922 = vmatpush1.bf16.msra.mxu0 0
        %1923 = vmatprep.subr.bf16.mxu0 0
        %1924 = vmatpush1.bf16.msra.mxu0 0
        %1925 = vmatprep.subr.bf16.mxu0 0
        %1926 = vmatpush1.bf16.msra.mxu0 0
        %1927 = vmatprep.subr.bf16.mxu0 0
        %1928 = vmatpush1.bf16.msra.mxu0 0
        %1929 = vmatprep.subr.bf16.mxu0 0
        %1930 = vmatpush1.bf16.msra.mxu0 0
        %1931 = vmatprep.subr.bf16.mxu0 0
        %1932 = vmatpush1.bf16.msra.mxu0 0
        %1933 = vmatprep.mubr.bf16.mxu0 0
        %1934 = vmatmul.mubr.bf16.gmra.mrb[0].mxu0 %v1817
        %v1935 = vpop.f32.mrb[0].mxu0
        %v1936 = vadd.f32 %v1895, %v1935
        %v1937 = vpop.f32.mrb[0].mxu0
        %v1938 = vadd.f32 %v1897, %v1937
        %v1939 = vpop.f32.mrb[0].mxu0
        %v1940 = vpop.f32.mrb[0].mxu0
        %1941 = vdwg.mxu0
        %1942 = vmatprep.subr.bf16.mxu0 %v1531
        %1943 = vmatpush1.bf16.msra.mxu0 %v1530
        %1944 = vmatprep.subr.bf16.mxu0 %v1535
        %1945 = vmatpush1.bf16.msra.mxu0 %v1534
        %1946 = vmatprep.subr.bf16.mxu0 %v1539
        %1947 = vmatpush1.bf16.msra.mxu0 %v1538
        %1948 = vmatprep.subr.bf16.mxu0 %v1543
        %1949 = vmatpush1.bf16.msra.mxu0 %v1542
        %1950 = vmatprep.subr.bf16.mxu0 %v1547
        %1951 = vmatpush1.bf16.msra.mxu0 %v1546
        %1952 = vmatprep.subr.bf16.mxu0 %v1551
        %1953 = vmatpush1.bf16.msra.mxu0 %v1550
        %1954 = vmatprep.subr.bf16.mxu0 %v1555
        %1955 = vmatpush1.bf16.msra.mxu0 %v1554
        %1956 = vmatprep.subr.bf16.mxu0 %v1559
        %1957 = vmatpush1.bf16.msra.mxu0 %v1558
        %1958 = vmatprep.subr.bf16.mxu0 %v1563
        %1959 = vmatpush1.bf16.msra.mxu0 %v1562
        %1960 = vmatprep.subr.bf16.mxu0 %v1567
        %1961 = vmatpush1.bf16.msra.mxu0 %v1566
        %1962 = vmatprep.subr.bf16.mxu0 %v1571
        %1963 = vmatpush1.bf16.msra.mxu0 %v1570
        %1964 = vmatprep.subr.bf16.mxu0 %v1575
        %1965 = vmatpush1.bf16.msra.mxu0 %v1574
        %1966 = vmatprep.subr.bf16.mxu0 %v1579
        %1967 = vmatpush1.bf16.msra.mxu0 %v1578
        %1968 = vmatprep.subr.bf16.mxu0 %v1583
        %1969 = vmatpush1.bf16.msra.mxu0 %v1582
        %1970 = vmatprep.subr.bf16.mxu0 %v1587
        %1971 = vmatpush1.bf16.msra.mxu0 %v1586
        %1972 = vmatprep.subr.bf16.mxu0 %v1591
        %1973 = vmatpush1.bf16.msra.mxu0 %v1590
        %1974 = vmatprep.mubr.bf16.mxu0 %v942
        %1975 = vmatmul.mubr.bf16.gmra.mrb[0].mxu0 %v938
        %v1976 = vpop.f32.mrb[0].mxu0
        %v1977 = vadd.f32 0.0, %v1976
        %v1978 = vpop.f32.mrb[0].mxu0
        %v1979 = vadd.f32 0.0, %v1978
        %v1980 = vpop.f32.mrb[0].mxu0
        %v1981 = vpop.f32.mrb[0].mxu0
        %1982 = vdwg.mxu0
        %1983 = vmatprep.subr.bf16.mxu0 %v1595
        %1984 = vmatpush1.bf16.msra.mxu0 %v1594
        %1985 = vmatprep.subr.bf16.mxu0 %v1599
        %1986 = vmatpush1.bf16.msra.mxu0 %v1598
        %1987 = vmatprep.subr.bf16.mxu0 %v1603
        %1988 = vmatpush1.bf16.msra.mxu0 %v1602
        %1989 = vmatprep.subr.bf16.mxu0 %v1607
        %1990 = vmatpush1.bf16.msra.mxu0 %v1606
        %1991 = vmatprep.subr.bf16.mxu0 %v1611
        %1992 = vmatpush1.bf16.msra.mxu0 %v1610
        %1993 = vmatprep.subr.bf16.mxu0 %v1615
        %1994 = vmatpush1.bf16.msra.mxu0 %v1614
        %1995 = vmatprep.subr.bf16.mxu0 %v1619
        %1996 = vmatpush1.bf16.msra.mxu0 %v1618
        %1997 = vmatprep.subr.bf16.mxu0 %v1623
        %1998 = vmatpush1.bf16.msra.mxu0 %v1622
        %1999 = vmatprep.subr.bf16.mxu0 %v1627
        %2000 = vmatpush1.bf16.msra.mxu0 %v1626
        %2001 = vmatprep.subr.bf16.mxu0 %v1631
        %2002 = vmatpush1.bf16.msra.mxu0 %v1630
        %2003 = vmatprep.subr.bf16.mxu0 %v1635
        %2004 = vmatpush1.bf16.msra.mxu0 %v1634
        %2005 = vmatprep.subr.bf16.mxu0 %v1639
        %2006 = vmatpush1.bf16.msra.mxu0 %v1638
        %2007 = vmatprep.subr.bf16.mxu0 %v1643
        %2008 = vmatpush1.bf16.msra.mxu0 %v1642
        %2009 = vmatprep.subr.bf16.mxu0 %v1647
        %2010 = vmatpush1.bf16.msra.mxu0 %v1646
        %2011 = vmatprep.subr.bf16.mxu0 %v1651
        %2012 = vmatpush1.bf16.msra.mxu0 %v1650
        %2013 = vmatprep.subr.bf16.mxu0 %v1655
        %2014 = vmatpush1.bf16.msra.mxu0 %v1654
        %2015 = vmatprep.mubr.bf16.mxu0 %v950
        %2016 = vmatmul.mubr.bf16.gmra.mrb[0].mxu0 %v946
        %v2017 = vpop.f32.mrb[0].mxu0
        %v2018 = vadd.f32 %v1977, %v2017
        %v2019 = vpop.f32.mrb[0].mxu0
        %v2020 = vadd.f32 %v1979, %v2019
        %v2021 = vpop.f32.mrb[0].mxu0
        %v2022 = vpop.f32.mrb[0].mxu0
        %2023 = vdwg.mxu0
        %2024 = vmatprep.subr.bf16.mxu0 %v1659
        %2025 = vmatpush1.bf16.msra.mxu0 %v1658
        %2026 = vmatprep.subr.bf16.mxu0 %v1663
        %2027 = vmatpush1.bf16.msra.mxu0 %v1662
        %2028 = vmatprep.subr.bf16.mxu0 %v1667
        %2029 = vmatpush1.bf16.msra.mxu0 %v1666
        %2030 = vmatprep.subr.bf16.mxu0 %v1671
        %2031 = vmatpush1.bf16.msra.mxu0 %v1670
        %2032 = vmatprep.subr.bf16.mxu0 0
        %2033 = vmatpush1.bf16.msra.mxu0 0
        %2034 = vmatprep.subr.bf16.mxu0 0
        %2035 = vmatpush1.bf16.msra.mxu0 0
        %2036 = vmatprep.subr.bf16.mxu0 0
        %2037 = vmatpush1.bf16.msra.mxu0 0
        %2038 = vmatprep.subr.bf16.mxu0 0
        %2039 = vmatpush1.bf16.msra.mxu0 0
        %2040 = vmatprep.subr.bf16.mxu0 0
        %2041 = vmatpush1.bf16.msra.mxu0 0
        %2042 = vmatprep.subr.bf16.mxu0 0
        %2043 = vmatpush1.bf16.msra.mxu0 0
        %2044 = vmatprep.subr.bf16.mxu0 0
        %2045 = vmatpush1.bf16.msra.mxu0 0
        %2046 = vmatprep.subr.bf16.mxu0 0
        %2047 = vmatpush1.bf16.msra.mxu0 0
        %2048 = vmatprep.subr.bf16.mxu0 0
        %2049 = vmatpush1.bf16.msra.mxu0 0
        %2050 = vmatprep.subr.bf16.mxu0 0
        %2051 = vmatpush1.bf16.msra.mxu0 0
        %2052 = vmatprep.subr.bf16.mxu0 0
        %2053 = vmatpush1.bf16.msra.mxu0 0
        %2054 = vmatprep.subr.bf16.mxu0 0
        %2055 = vmatpush1.bf16.msra.mxu0 0
        %2056 = vmatprep.mubr.bf16.mxu0 0
        %2057 = vmatmul.mubr.bf16.gmra.mrb[0].mxu0 %v1817
        %v2058 = vpop.f32.mrb[0].mxu0
        %v2059 = vadd.f32 %v2018, %v2058
        %v2060 = vpop.f32.mrb[0].mxu0
        %v2061 = vadd.f32 %v2020, %v2060
        %v2062 = vpop.f32.mrb[0].mxu0
        %v2063 = vpop.f32.mrb[0].mxu0
        %2064 = vdwg.mxu0
        %v2066 = vrot.slane %v1938, 7
        %v2068 = vsel %vm854, %v1938, %v2066
        %v2069 = vmax.f32 %v1936, %v1938
        %v2070 = vmax.f32 %v2069, %v2068
        %v2072 = vrot.slane %v2061, 7
        %v2074 = vsel %vm854, %v2061, %v2072
        %v2075 = vmax.f32 %v2059, %v2061
        %v2076 = vmax.f32 %v2075, %v2074
        %v2077 = vmax.f32 %v2070, %v2076
        %v2078 = vmax.f32 %v2077, %v864
        %v2079 = vadd.f32 %v2078, %v201
        %v2080 = vpack.c.bf16 %v2079, %v2079
        %s2081 = smul.addr %s859, 2
        %s2082 = scalar_lea.vmem %s192, %s2081
        %2083 = vst [vmem:[%s2082] sm:$0x3] %v2080
      $region37: #{input_stem_forward.1} parent=31 // loop_footer
        %s863 = sadd.s32 1, %s859
      $region38: #{input_stem_forward.1} parent=31 // loop_footer_branch
        %858 = sbr.rel target = $region34
      $region39: #{input_stem_forward.1} parent=31 // loop_exit
        _
      %s2084 = smul.u32 4, %s19
      %p2085 = scmp.lt.s32.totalorder %s18, 1
      %s2086 = scalar_select %p2085, %s18, 1
      %p2087 = scmp.lt.s32.totalorder %s2084, 3
      %s2088 = scalar_select %p2087, %s2084, 3
      %s2089 = smul.addr %s2086, 4
      %s2090 = sadd.s32 %s2088, %s2089
      %s2091 = smul.addr %s2090, 2
      %s2092 = scalar_lea.vmem %s3, %s2091
      // Predicated region
      $region40: #{input_stem_forward.1} parent=31 // pred_check
        %p2093 = pneg %p114
      $region41: #{input_stem_forward.1} parent=31 // pred_check_branch
        %2095 = sbr.rel (%p2093) target = $region43
      $region42: #{input_stem_forward.1} parent=31 // pred_region
        %s2096 = smul.u32 4, %s19
      $region43: #{input_stem_forward.1} parent=31 // pred_fallthru
        _
    $region32: #{input_stem_forward.1} parent=5 // pred_fallthru
      _
    %p2097 = scmp.le.s32.totalorder 2, %s9
    // Predicated region
    $region44: #{input_stem_forward.1} parent=5 // pred_check
      %p2098 = pneg %p2097
    $region45: #{input_stem_forward.1} parent=5 // pred_check_branch
      %2100 = sbr.rel (%p2098) target = $region47
    $region46: #{input_stem_forward.1} parent=5 // pred_region
      %s2101 = ssub.s32 %s9, 2
      // Predicated region
      $region48: #{input_stem_forward.1} parent=46 // pred_check
        %p2102 = pneg %p120
      $region49: #{input_stem_forward.1} parent=46 // pred_check_branch
        %2104 = sbr.rel (%p2102) target = $region51
      $region50: #{input_stem_forward.1} parent=46 // pred_region
        %s2105 = smul.u32 4, %s21
        %p2106 = scmp.lt.s32.totalorder %s20, 1
        %s2107 = scalar_select %p2106, %s20, 1
        %p2108 = scmp.lt.s32.totalorder %s2105, 3
        %s2109 = scalar_select %p2108, %s2105, 3
        %s2110 = smul.addr %s2107, 4
        %s2111 = sadd.s32 %s2109, %s2110
        %s2112 = smul.addr %s2111, 2
        %s2113 = scalar_lea.vmem %s3, %s2112
      $region51: #{input_stem_forward.1} parent=46 // pred_fallthru
        _
    $region47: #{input_stem_forward.1} parent=5 // pred_fallthru
      _
  $region6: #{input_stem_forward.1} parent=0 // loop_footer
    %s13 = sadd.s32 1, %s9
  $region7: #{input_stem_forward.1} parent=0 // loop_footer_branch
    %8 = sbr.rel target = $region3
  $region8: #{input_stem_forward.1} parent=0 // loop_exit
    _

</llo_original>
